<compile_context>
chip_gen: v7x
topology: tpu7x:2x2x1
jax: 0.10.0
libtpu: 0.0.40
codegen_flags: <defaults>
</compile_context>

<pallas_src>
import jax
import jax.numpy as jnp
from jax.experimental import pallas as pl
from jax.experimental.pallas import tpu as pltpu


def gcn_net_kernel(a_ref, x_ref, w1_ref, b1_ref, w2_ref, b2_ref, out_ref):
    """conv1 -> ReLU -> (dropout=id) -> conv2 -> global_max_pool for NB_TILE batches.

    Graphs are packed as contiguous, fixed-size node blocks inside each batch,
    so global_max_pool is a per-block sublane max (no node->graph mask needed).
    """
    nb_tile, n, _ = a_ref.shape
    rows = out_ref.shape[0]
    b = rows // nb_tile            # graphs per batch
    npg = n // b                   # nodes per graph (contiguous block)

    # --- conv1 stage A: AX_t = A_hat_t @ X_t (per batch: different A each) ----
    ax_all = jnp.concatenate(
        [jnp.dot(a_ref[t], x_ref[t], preferred_element_type=jnp.float32)
         for t in range(nb_tile)], axis=0)                     # (nb_tile*N, Fin) f32

    # --- conv1 stage B (+b1, ReLU): W1 load amortized over stacked LHS --------
    h_all = jnp.maximum(
        jnp.dot(ax_all.astype(jnp.bfloat16), w1_ref[...],
                preferred_element_type=jnp.float32) + b1_ref[...], 0.0)  # (nb_tile*N, H)

    # --- Dropout(0.4): identity at inference -----------------------------------
    # TODO(synk): training-mode stochastic dropout (pltpu.prng_*) not implemented.

    # --- conv2 stage A: HW = H @ W2 (stacked; W2 lane-padded to f_pad) ----------
    hw_all = jnp.dot(h_all.astype(jnp.bfloat16), w2_ref[...],
                     preferred_element_type=jnp.float32).astype(jnp.bfloat16)

    # --- conv2 stage B + global_max_pool over contiguous graph blocks ----------
    pooled = []
    for t in range(nb_tile):
        y_t = jnp.dot(a_ref[t], hw_all[t * n:(t + 1) * n, :],
                      preferred_element_type=jnp.float32)       # (N, f_pad) f32
        for g in range(b):
            blk = y_t[g * npg:(g + 1) * npg, :]                 # sublane-aligned slice
            pooled.append(jnp.max(blk, axis=0, keepdims=True))  # (1, f_pad)

    # Bias b2 commutes with the per-column max -> add once per pooled row.
    out_ref[...] = jnp.concatenate(pooled, axis=0) + b2_ref[...]  # dense (rows, f_pad)


def net_forward(a_hat, x, w1, b1, w2, b2, graphs_per_batch):
    """a_hat: (NB,N,N) normalized adjacency (graphs block-diagonal, contiguous,
    fixed-size), x: (NB,N,Fin), w1:(Fin,H), b1:(1,H), w2:(H,Fout), b2:(1,Fout).
    Returns (NB, graphs_per_batch, Fout) f32."""
    nb, n, _ = a_hat.shape
    f_in = x.shape[-1]
    hid = w1.shape[1]
    f_out = w2.shape[1]
    b = graphs_per_batch
    f_pad = 128 * pl.cdiv(f_out, 128)          # lane-dense output width

    # Grid sizing: v5e/v6e have one TensorCore -> fold everything into one step.
    # v7x has two TCs -> two steps with dimension_semantics=("parallel",).
    try:
        kind = jax.devices()[0].device_kind.lower()
        steps = 2 if ("v7" in kind and nb % 2 == 0) else 1
    except Exception:  # pragma: no cover - conservative fallback
        steps = 1
    nb_tile = nb // steps
    rows = nb_tile * b                         # pooled rows per step

    # bf16 inputs/weights (f32 accumulation in-kernel); biases/output stay f32.
    a_bf = a_hat.astype(jnp.bfloat16)
    x_bf = x.astype(jnp.bfloat16)
    w1_bf = w1.astype(jnp.bfloat16)
    w2_bf = jnp.zeros((hid, f_pad), jnp.bfloat16).at[:, :f_out].set(w2.astype(jnp.bfloat16))
    b1_f = b1.reshape(1, hid).astype(jnp.float32)
    b2_f = jnp.zeros((1, f_pad), jnp.float32).at[:, :f_out].set(
        b2.reshape(1, f_out).astype(jnp.float32))

    flops = 2 * nb * (n * n * f_in + n * f_in * hid + n * hid * f_pad + n * n * f_pad)
    bytes_accessed = (a_bf.size * 2 + x_bf.size * 2 + w1_bf.size * 2 + w2_bf.size * 2
                      + b1_f.size * 4 + b2_f.size * 4 + steps * rows * f_pad * 4)

    out = pl.pallas_call(
        gcn_net_kernel,
        out_shape=jax.ShapeDtypeStruct((steps, rows, f_pad), jnp.float32),
        grid=(steps,),
        in_specs=[
            pl.BlockSpec((nb_tile, n, n), lambda i: (i, 0, 0)),     # A_hat (NB_TILE batches)
            pl.BlockSpec((nb_tile, n, f_in), lambda i: (i, 0, 0)),  # X
            pl.BlockSpec((f_in, hid), lambda i: (0, 0)),            # W1 (shared)
            pl.BlockSpec((1, hid), lambda i: (0, 0)),               # b1
            pl.BlockSpec((hid, f_pad), lambda i: (0, 0)),           # W2 (lane-padded)
            pl.BlockSpec((1, f_pad), lambda i: (0, 0)),             # b2 (lane-padded)
        ],
        out_specs=pl.BlockSpec((None, rows, f_pad), lambda i: (i, 0, 0)),
        compiler_params=pltpu.CompilerParams(
            dimension_semantics=("parallel",)),                     # 2 TCs on v7x
        cost_estimate=pl.CostEstimate(
            flops=flops, transcendentals=0, bytes_accessed=bytes_accessed),
    )(a_bf, x_bf, w1_bf, b1_f, w2_bf, b2_f)

    return out.reshape(nb, b, f_pad)[:, :, :f_out]


if __name__ == "__main__":
    key = jax.random.PRNGKey(0)

    NB = 4                       # graph batches
    B = 2                        # graphs per batch (pooling groups)
    NODES_PER_GRAPH = 64
    N = B * NODES_PER_GRAPH      # 128 nodes per batch -> lane/MXU aligned
    E_PER_GRAPH = 256
    F_IN, HID, F_OUT = 9, 16, 1

    k_x, k_w1, k_w2, k_edges = jax.random.split(key, 4)

    x = jax.random.normal(k_x, (NB, N, F_IN), jnp.float32)

    # Block-diagonal batched adjacency: per (batch, graph) random edges + self-loops,
    # symmetric-normalized A_hat = D^{-1/2}(A+I)D^{-1/2}   (plain-JAX glue).
    a_list = []
    ek = k_edges
    for _nb in range(NB):
        adj = jnp.eye(N, dtype=jnp.float32)                      # self-loops
        for g in range(B):
            ek, k_s, k_d, k_w = jax.random.split(ek, 4)
            src = jax.random.randint(k_s, (E_PER_GRAPH,), 0, NODES_PER_GRAPH) + g * NODES_PER_GRAPH
            dst = jax.random.randint(k_d, (E_PER_GRAPH,), 0, NODES_PER_GRAPH) + g * NODES_PER_GRAPH
            w = jax.random.uniform(k_w, (E_PER_GRAPH,), jnp.float32, 0.1, 1.0)
            adj = adj.at[src, dst].add(w)
        deg = adj.sum(axis=1)
        d = jnp.where(deg > 0, jax.lax.rsqrt(deg), 0.0)
        a_list.append(d[:, None] * adj * d[None, :])
    a_hat = jnp.stack(a_list, axis=0)                            # (NB, N, N)

    # Parameters for CNN_Layer(9,16) and CNN_Layer(16,1), glorot init.
    def glorot(k, shape):
        lim = jnp.sqrt(6.0 / (shape[0] + shape[1]))
        return jax.random.uniform(k, shape, jnp.float32, -lim, lim)

    w1 = glorot(k_w1, (F_IN, HID))
    b1 = jnp.zeros((1, HID), jnp.float32)
    w2 = glorot(k_w2, (HID, F_OUT))
    b2 = jnp.zeros((1, F_OUT), jnp.float32)

    out = jax.block_until_ready(net_forward(a_hat, x, w1, b1, w2, b2, B))
    assert out.shape == (NB, B, F_OUT)

    # Plain-JAX reference with the same bf16-input / f32-accumulate math.
    a_bf = a_hat.astype(jnp.bfloat16)
    x_bf = x.astype(jnp.bfloat16)
    w1_bf = w1.astype(jnp.bfloat16)
    w2_bf = w2.astype(jnp.bfloat16)

    def ref_one(a, xx):
        ax = jnp.dot(a, xx, preferred_element_type=jnp.float32)
        h = jnp.maximum(jnp.dot(ax.astype(jnp.bfloat16), w1_bf,
                                preferred_element_type=jnp.float32) + b1, 0.0)
        hw = jnp.dot(h.astype(jnp.bfloat16), w2_bf, preferred_element_type=jnp.float32)
        y = jnp.dot(a, hw.astype(jnp.bfloat16), preferred_element_type=jnp.float32) + b2
        return jnp.max(y.reshape(B, NODES_PER_GRAPH, F_OUT), axis=1)

    ref = jax.vmap(ref_one)(a_bf, x_bf)                          # (NB, B, F_OUT)
    err = jnp.max(jnp.abs(out - ref))
    assert jnp.allclose(out, ref, atol=1e-2, rtol=1e-2), f"max err {err}"

    print("KERNEL_OK")
</pallas_src>

<mosaic_0001>
module attributes {stable_mosaic.version = 11 : i64} {
  func.func @gcn_net_kernel(%arg0: i32, %arg1: memref<4x128x128xbf16, #tpu.memory_space<vmem>>, %arg2: memref<4x128x9xbf16, #tpu.memory_space<vmem>>, %arg3: memref<9x16xbf16, #tpu.memory_space<vmem>>, %arg4: memref<1x16xf32, #tpu.memory_space<vmem>>, %arg5: memref<16x128xbf16, #tpu.memory_space<vmem>>, %arg6: memref<1x128xf32, #tpu.memory_space<vmem>>, %arg7: memref<1x8x128xf32, #tpu.memory_space<vmem>>) attributes {dimension_semantics = [#tpu.dimension_semantics<parallel>], iteration_bounds = array<i64: 1>, scalar_prefetch = 0 : i64, scratch_operands = 0 : i64, tpu.core_type = #tpu.core_type<tc>, window_params = [{transform_indices = @transform_0, window_bounds = array<i64: 4, 128, 128>}, {transform_indices = @transform_1, window_bounds = array<i64: 4, 128, 9>}, {pipeline_mode = #tpu.pipeline_mode<synchronous>, transform_indices = @transform_2, window_bounds = array<i64: 9, 16>}, {pipeline_mode = #tpu.pipeline_mode<synchronous>, transform_indices = @transform_3, window_bounds = array<i64: 1, 16>}, {pipeline_mode = #tpu.pipeline_mode<synchronous>, transform_indices = @transform_4, window_bounds = array<i64: 16, 128>}, {pipeline_mode = #tpu.pipeline_mode<synchronous>, transform_indices = @transform_5, window_bounds = array<i64: 1, 128>}, {transform_indices = @transform_6, window_bounds = array<i64: 1, 8, 128>}]} {
    %c0 = arith.constant 0 : index
    %c0_0 = arith.constant 0 : index
    %c0_1 = arith.constant 0 : index
    %0 = vector.load %arg1[%c0, %c0_0, %c0_1] : memref<4x128x128xbf16, #tpu.memory_space<vmem>>, vector<1x128x128xbf16>
    %1 = vector.shape_cast %0 : vector<1x128x128xbf16> to vector<128x128xbf16>
    %c0_2 = arith.constant 0 : index
    %c0_3 = arith.constant 0 : index
    %c0_4 = arith.constant 0 : index
    %2 = vector.load %arg2[%c0_2, %c0_3, %c0_4] : memref<4x128x9xbf16, #tpu.memory_space<vmem>>, vector<1x128x9xbf16>
    %3 = vector.shape_cast %2 : vector<1x128x9xbf16> to vector<128x9xbf16>
    %cst = arith.constant dense<0.000000e+00> : vector<128x9xf32>
    %4 = tpu.matmul %1, %3, %cst {dimension_numbers = #tpu.dot_dimension_numbers<[1], [0], [0], [1], [0, 0, 1, 1], [], []>} : vector<128x128xbf16>, vector<128x9xbf16>, vector<128x9xf32> -> vector<128x9xf32>
    %c1 = arith.constant 1 : index
    %c0_5 = arith.constant 0 : index
    %c0_6 = arith.constant 0 : index
    %5 = vector.load %arg1[%c1, %c0_5, %c0_6] : memref<4x128x128xbf16, #tpu.memory_space<vmem>>, vector<1x128x128xbf16>
    %6 = vector.shape_cast %5 : vector<1x128x128xbf16> to vector<128x128xbf16>
    %c1_7 = arith.constant 1 : index
    %c0_8 = arith.constant 0 : index
    %c0_9 = arith.constant 0 : index
    %7 = vector.load %arg2[%c1_7, %c0_8, %c0_9] : memref<4x128x9xbf16, #tpu.memory_space<vmem>>, vector<1x128x9xbf16>
    %8 = vector.shape_cast %7 : vector<1x128x9xbf16> to vector<128x9xbf16>
    %cst_10 = arith.constant dense<0.000000e+00> : vector<128x9xf32>
    %9 = tpu.matmul %6, %8, %cst_10 {dimension_numbers = #tpu.dot_dimension_numbers<[1], [0], [0], [1], [0, 0, 1, 1], [], []>} : vector<128x128xbf16>, vector<128x9xbf16>, vector<128x9xf32> -> vector<128x9xf32>
    %c2 = arith.constant 2 : index
    %c0_11 = arith.constant 0 : index
    %c0_12 = arith.constant 0 : index
    %10 = vector.load %arg1[%c2, %c0_11, %c0_12] : memref<4x128x128xbf16, #tpu.memory_space<vmem>>, vector<1x128x128xbf16>
    %11 = vector.shape_cast %10 : vector<1x128x128xbf16> to vector<128x128xbf16>
    %c2_13 = arith.constant 2 : index
    %c0_14 = arith.constant 0 : index
    %c0_15 = arith.constant 0 : index
    %12 = vector.load %arg2[%c2_13, %c0_14, %c0_15] : memref<4x128x9xbf16, #tpu.memory_space<vmem>>, vector<1x128x9xbf16>
    %13 = vector.shape_cast %12 : vector<1x128x9xbf16> to vector<128x9xbf16>
    %cst_16 = arith.constant dense<0.000000e+00> : vector<128x9xf32>
    %14 = tpu.matmul %11, %13, %cst_16 {dimension_numbers = #tpu.dot_dimension_numbers<[1], [0], [0], [1], [0, 0, 1, 1], [], []>} : vector<128x128xbf16>, vector<128x9xbf16>, vector<128x9xf32> -> vector<128x9xf32>
    %c3 = arith.constant 3 : index
    %c0_17 = arith.constant 0 : index
    %c0_18 = arith.constant 0 : index
    %15 = vector.load %arg1[%c3, %c0_17, %c0_18] : memref<4x128x128xbf16, #tpu.memory_space<vmem>>, vector<1x128x128xbf16>
    %16 = vector.shape_cast %15 : vector<1x128x128xbf16> to vector<128x128xbf16>
    %c3_19 = arith.constant 3 : index
    %c0_20 = arith.constant 0 : index
    %c0_21 = arith.constant 0 : index
    %17 = vector.load %arg2[%c3_19, %c0_20, %c0_21] : memref<4x128x9xbf16, #tpu.memory_space<vmem>>, vector<1x128x9xbf16>
    %18 = vector.shape_cast %17 : vector<1x128x9xbf16> to vector<128x9xbf16>
    %cst_22 = arith.constant dense<0.000000e+00> : vector<128x9xf32>
    %19 = tpu.matmul %16, %18, %cst_22 {dimension_numbers = #tpu.dot_dimension_numbers<[1], [0], [0], [1], [0, 0, 1, 1], [], []>} : vector<128x128xbf16>, vector<128x9xbf16>, vector<128x9xf32> -> vector<128x9xf32>
    %20 = tpu.concatenate %4, %9, %14, %19 in 0 : vector<128x9xf32>, vector<128x9xf32>, vector<128x9xf32>, vector<128x9xf32> -> vector<512x9xf32>
    %21 = arith.truncf %20 : vector<512x9xf32> to vector<512x9xbf16>
    %c0_23 = arith.constant 0 : index
    %c0_24 = arith.constant 0 : index
    %22 = vector.load %arg3[%c0_23, %c0_24] : memref<9x16xbf16, #tpu.memory_space<vmem>>, vector<9x16xbf16>
    %cst_25 = arith.constant dense<0.000000e+00> : vector<512x16xf32>
    %23 = tpu.matmul %21, %22, %cst_25 {dimension_numbers = #tpu.dot_dimension_numbers<[1], [0], [0], [1], [0, 0, 1, 1], [], []>} : vector<512x9xbf16>, vector<9x16xbf16>, vector<512x16xf32> -> vector<512x16xf32>
    %c0_26 = arith.constant 0 : index
    %c0_27 = arith.constant 0 : index
    %24 = vector.load %arg4[%c0_26, %c0_27] : memref<1x16xf32, #tpu.memory_space<vmem>>, vector<1x16xf32>
    %25 = vector.broadcast %24 : vector<1x16xf32> to vector<512x16xf32>
    %26 = arith.addf %23, %25 : vector<512x16xf32>
    %cst_28 = arith.constant 0.000000e+00 : f32
    %27 = vector.broadcast %cst_28 : f32 to vector<512x16xf32>
    %28 = arith.maximumf %26, %27 : vector<512x16xf32>
    %29 = arith.truncf %28 : vector<512x16xf32> to vector<512x16xbf16>
    %c0_29 = arith.constant 0 : index
    %c0_30 = arith.constant 0 : index
    %30 = vector.load %arg5[%c0_29, %c0_30] : memref<16x128xbf16, #tpu.memory_space<vmem>>, vector<16x128xbf16>
    %cst_31 = arith.constant dense<0.000000e+00> : vector<512x128xf32>
    %31 = tpu.matmul %29, %30, %cst_31 {dimension_numbers = #tpu.dot_dimension_numbers<[1], [0], [0], [1], [0, 0, 1, 1], [], []>} : vector<512x16xbf16>, vector<16x128xbf16>, vector<512x128xf32> -> vector<512x128xf32>
    %32 = arith.truncf %31 : vector<512x128xf32> to vector<512x128xbf16>
    %c0_32 = arith.constant 0 : index
    %c0_33 = arith.constant 0 : index
    %c0_34 = arith.constant 0 : index
    %33 = vector.load %arg1[%c0_32, %c0_33, %c0_34] : memref<4x128x128xbf16, #tpu.memory_space<vmem>>, vector<1x128x128xbf16>
    %34 = vector.shape_cast %33 : vector<1x128x128xbf16> to vector<128x128xbf16>
    %35 = vector.extract_strided_slice %32 {offsets = [0, 0], sizes = [128, 128], strides = [1, 1]} : vector<512x128xbf16> to vector<128x128xbf16>
    %cst_35 = arith.constant dense<0.000000e+00> : vector<128x128xf32>
    %36 = tpu.matmul %34, %35, %cst_35 {dimension_numbers = #tpu.dot_dimension_numbers<[1], [0], [0], [1], [0, 0, 1, 1], [], []>} : vector<128x128xbf16>, vector<128x128xbf16>, vector<128x128xf32> -> vector<128x128xf32>
    %37 = vector.extract_strided_slice %36 {offsets = [0, 0], sizes = [64, 128], strides = [1, 1]} : vector<128x128xf32> to vector<64x128xf32>
    %cst_36 = arith.constant dense<0xFF800000> : vector<128xf32>
    %38 = vector.multi_reduction <maximumf>, %37, %cst_36 [0] : vector<64x128xf32> to vector<128xf32>
    %39 = vector.shape_cast %38 : vector<128xf32> to vector<1x128xf32>
    %40 = vector.extract_strided_slice %36 {offsets = [64, 0], sizes = [64, 128], strides = [1, 1]} : vector<128x128xf32> to vector<64x128xf32>
    %cst_37 = arith.constant dense<0xFF800000> : vector<128xf32>
    %41 = vector.multi_reduction <maximumf>, %40, %cst_37 [0] : vector<64x128xf32> to vector<128xf32>
    %42 = vector.shape_cast %41 : vector<128xf32> to vector<1x128xf32>
    %c1_38 = arith.constant 1 : index
    %c0_39 = arith.constant 0 : index
    %c0_40 = arith.constant 0 : index
    %43 = vector.load %arg1[%c1_38, %c0_39, %c0_40] : memref<4x128x128xbf16, #tpu.memory_space<vmem>>, vector<1x128x128xbf16>
    %44 = vector.shape_cast %43 : vector<1x128x128xbf16> to vector<128x128xbf16>
    %45 = vector.extract_strided_slice %32 {offsets = [128, 0], sizes = [128, 128], strides = [1, 1]} : vector<512x128xbf16> to vector<128x128xbf16>
    %cst_41 = arith.constant dense<0.000000e+00> : vector<128x128xf32>
    %46 = tpu.matmul %44, %45, %cst_41 {dimension_numbers = #tpu.dot_dimension_numbers<[1], [0], [0], [1], [0, 0, 1, 1], [], []>} : vector<128x128xbf16>, vector<128x128xbf16>, vector<128x128xf32> -> vector<128x128xf32>
    %47 = vector.extract_strided_slice %46 {offsets = [0, 0], sizes = [64, 128], strides = [1, 1]} : vector<128x128xf32> to vector<64x128xf32>
    %cst_42 = arith.constant dense<0xFF800000> : vector<128xf32>
    %48 = vector.multi_reduction <maximumf>, %47, %cst_42 [0] : vector<64x128xf32> to vector<128xf32>
    %49 = vector.shape_cast %48 : vector<128xf32> to vector<1x128xf32>
    %50 = vector.extract_strided_slice %46 {offsets = [64, 0], sizes = [64, 128], strides = [1, 1]} : vector<128x128xf32> to vector<64x128xf32>
    %cst_43 = arith.constant dense<0xFF800000> : vector<128xf32>
    %51 = vector.multi_reduction <maximumf>, %50, %cst_43 [0] : vector<64x128xf32> to vector<128xf32>
    %52 = vector.shape_cast %51 : vector<128xf32> to vector<1x128xf32>
    %c2_44 = arith.constant 2 : index
    %c0_45 = arith.constant 0 : index
    %c0_46 = arith.constant 0 : index
    %53 = vector.load %arg1[%c2_44, %c0_45, %c0_46] : memref<4x128x128xbf16, #tpu.memory_space<vmem>>, vector<1x128x128xbf16>
    %54 = vector.shape_cast %53 : vector<1x128x128xbf16> to vector<128x128xbf16>
    %55 = vector.extract_strided_slice %32 {offsets = [256, 0], sizes = [128, 128], strides = [1, 1]} : vector<512x128xbf16> to vector<128x128xbf16>
    %cst_47 = arith.constant dense<0.000000e+00> : vector<128x128xf32>
    %56 = tpu.matmul %54, %55, %cst_47 {dimension_numbers = #tpu.dot_dimension_numbers<[1], [0], [0], [1], [0, 0, 1, 1], [], []>} : vector<128x128xbf16>, vector<128x128xbf16>, vector<128x128xf32> -> vector<128x128xf32>
    %57 = vector.extract_strided_slice %56 {offsets = [0, 0], sizes = [64, 128], strides = [1, 1]} : vector<128x128xf32> to vector<64x128xf32>
    %cst_48 = arith.constant dense<0xFF800000> : vector<128xf32>
    %58 = vector.multi_reduction <maximumf>, %57, %cst_48 [0] : vector<64x128xf32> to vector<128xf32>
    %59 = vector.shape_cast %58 : vector<128xf32> to vector<1x128xf32>
    %60 = vector.extract_strided_slice %56 {offsets = [64, 0], sizes = [64, 128], strides = [1, 1]} : vector<128x128xf32> to vector<64x128xf32>
    %cst_49 = arith.constant dense<0xFF800000> : vector<128xf32>
    %61 = vector.multi_reduction <maximumf>, %60, %cst_49 [0] : vector<64x128xf32> to vector<128xf32>
    %62 = vector.shape_cast %61 : vector<128xf32> to vector<1x128xf32>
    %c3_50 = arith.constant 3 : index
    %c0_51 = arith.constant 0 : index
    %c0_52 = arith.constant 0 : index
    %63 = vector.load %arg1[%c3_50, %c0_51, %c0_52] : memref<4x128x128xbf16, #tpu.memory_space<vmem>>, vector<1x128x128xbf16>
    %64 = vector.shape_cast %63 : vector<1x128x128xbf16> to vector<128x128xbf16>
    %65 = vector.extract_strided_slice %32 {offsets = [384, 0], sizes = [128, 128], strides = [1, 1]} : vector<512x128xbf16> to vector<128x128xbf16>
    %cst_53 = arith.constant dense<0.000000e+00> : vector<128x128xf32>
    %66 = tpu.matmul %64, %65, %cst_53 {dimension_numbers = #tpu.dot_dimension_numbers<[1], [0], [0], [1], [0, 0, 1, 1], [], []>} : vector<128x128xbf16>, vector<128x128xbf16>, vector<128x128xf32> -> vector<128x128xf32>
    %67 = vector.extract_strided_slice %66 {offsets = [0, 0], sizes = [64, 128], strides = [1, 1]} : vector<128x128xf32> to vector<64x128xf32>
    %cst_54 = arith.constant dense<0xFF800000> : vector<128xf32>
    %68 = vector.multi_reduction <maximumf>, %67, %cst_54 [0] : vector<64x128xf32> to vector<128xf32>
    %69 = vector.shape_cast %68 : vector<128xf32> to vector<1x128xf32>
    %70 = vector.extract_strided_slice %66 {offsets = [64, 0], sizes = [64, 128], strides = [1, 1]} : vector<128x128xf32> to vector<64x128xf32>
    %cst_55 = arith.constant dense<0xFF800000> : vector<128xf32>
    %71 = vector.multi_reduction <maximumf>, %70, %cst_55 [0] : vector<64x128xf32> to vector<128xf32>
    %72 = vector.shape_cast %71 : vector<128xf32> to vector<1x128xf32>
    %73 = tpu.concatenate %39, %42, %49, %52, %59, %62, %69, %72 in 0 : vector<1x128xf32>, vector<1x128xf32>, vector<1x128xf32>, vector<1x128xf32>, vector<1x128xf32>, vector<1x128xf32>, vector<1x128xf32>, vector<1x128xf32> -> vector<8x128xf32>
    %c0_56 = arith.constant 0 : index
    %c0_57 = arith.constant 0 : index
    %74 = vector.load %arg6[%c0_56, %c0_57] : memref<1x128xf32, #tpu.memory_space<vmem>>, vector<1x128xf32>
    %75 = vector.broadcast %74 : vector<1x128xf32> to vector<8x128xf32>
    %76 = arith.addf %73, %75 : vector<8x128xf32>
    %c0_58 = arith.constant 0 : index
    %c0_59 = arith.constant 0 : index
    %c0_60 = arith.constant 0 : index
    %77 = vector.load %arg7[%c0_58, %c0_59, %c0_60] : memref<1x8x128xf32, #tpu.memory_space<vmem>>, vector<1x8x128xf32>
    %78 = vector.shape_cast %77 : vector<1x8x128xf32> to vector<8x128xf32>
    %79 = vector.shape_cast %76 : vector<8x128xf32> to vector<1x8x128xf32>
    tpu.vector_store %arg7[%c0_58, %c0_59, %c0_60], %79 {strides = array<i32>} : memref<1x8x128xf32, #tpu.memory_space<vmem>>, vector<1x8x128xf32>,
    return
  }
  func.func @transform_0(%arg0: i32) -> (i32, i32, i32) {
    %c0_i32 = arith.constant 0 : i32
    %c0_i32_0 = arith.constant 0 : i32
    %c0_i32_1 = arith.constant 0 : i32
    return %arg0, %c0_i32, %c0_i32_0 : i32, i32, i32
  }
  func.func @transform_1(%arg0: i32) -> (i32, i32, i32) {
    %c0_i32 = arith.constant 0 : i32
    %c0_i32_0 = arith.constant 0 : i32
    %c0_i32_1 = arith.constant 0 : i32
    return %arg0, %c0_i32, %c0_i32_0 : i32, i32, i32
  }
  func.func @transform_2(%arg0: i32) -> (i32, i32) {
    %c0_i32 = arith.constant 0 : i32
    %c0_i32_0 = arith.constant 0 : i32
    %c0_i32_1 = arith.constant 0 : i32
    return %c0_i32, %c0_i32_0 : i32, i32
  }
  func.func @transform_3(%arg0: i32) -> (i32, i32) {
    %c0_i32 = arith.constant 0 : i32
    %c0_i32_0 = arith.constant 0 : i32
    %c0_i32_1 = arith.constant 0 : i32
    return %c0_i32, %c0_i32_0 : i32, i32
  }
  func.func @transform_4(%arg0: i32) -> (i32, i32) {
    %c0_i32 = arith.constant 0 : i32
    %c0_i32_0 = arith.constant 0 : i32
    %c0_i32_1 = arith.constant 0 : i32
    return %c0_i32, %c0_i32_0 : i32, i32
  }
  func.func @transform_5(%arg0: i32) -> (i32, i32) {
    %c0_i32 = arith.constant 0 : i32
    %c0_i32_0 = arith.constant 0 : i32
    %c0_i32_1 = arith.constant 0 : i32
    return %c0_i32, %c0_i32_0 : i32, i32
  }
  func.func @transform_6(%arg0: i32) -> (i32, i32, i32) {
    %c0_i32 = arith.constant 0 : i32
    %c0_i32_0 = arith.constant 0 : i32
    %c0_i32_1 = arith.constant 0 : i32
    return %arg0, %c0_i32, %c0_i32_0 : i32, i32, i32
  }
}

</mosaic_0001>

<llo_original>
// kernel: tpu_custom_call.1
$region0: #{tpu_custom_call.1}
  #allocation0 [shape = 'u32[]', space=smem, size = 0x4, offset = 0x4, fixed_abs, tag = 'smem constant byte address 0x4 - core index']
  #allocation1 [shape = 'u32[144,128]{1,0:T(1,128)}', space=vmem, size = 0x12000, scoped, tag = 'internal scratch']
  %s0 = inlined_call_operand.vmem [shape: bf16[4,128,128], index: 0, kind: input, shape index: {}]
  %s1 = inlined_call_operand.vmem [shape: bf16[4,128,9], index: 1, kind: input, shape index: {}]
  %s2 = inlined_call_operand.vmem [shape: bf16[9,16], index: 2, kind: input, shape index: {}]
  %s3 = inlined_call_operand.vmem [shape: f32[1,16], index: 3, kind: input, shape index: {}]
  %s4 = inlined_call_operand.vmem [shape: bf16[16,128], index: 4, kind: input, shape index: {}]
  %s5 = inlined_call_operand.vmem [shape: f32[1,128], index: 5, kind: input, shape index: {}]
  %s6 = inlined_call_operand.hbm [shape: f32[1,8,128], index: 6, kind: output, shape index: {}]
  %s7 = sld [smem:[#allocation0]]
  $region34: #{tpu_custom_call.1} parent=0
    _
  %s9 = ssub.s32 1, %s7
  %s10 = scalar_select 0, %s9, %s7
  $region1: #{tpu_custom_call.1} parent=0
    #allocation2 [shape = 'u8[4096]{0}', space=vmem, size = 0x1000, scoped, tag = 'output window, operand 0, single buffered']
    #allocation3 [shape = 's32[1]{0}', space=sflag, size = 0x4, scoped, tag = 'scoped memory for tpu_custom_call.1']
    %11 = vsyncpa [#allocation3], 0
    // Predicated region
    $region2: #{tpu_custom_call.1} parent=1 // pred_check
      _
    $region3: #{tpu_custom_call.1} parent=1 // pred_check_branch
      %13 = sbr.rel (0) target = $region5
    $region4: #{tpu_custom_call.1} parent=1 // pred_region
      _
    $region5: #{tpu_custom_call.1} parent=1 // pred_fallthru
      _
    // Predicated region
    $region6: #{tpu_custom_call.1} parent=1 // pred_check
      _
    $region7: #{tpu_custom_call.1} parent=1 // pred_check_branch
      %15 = sbr.rel (0) target = $region9
    $region8: #{tpu_custom_call.1} parent=1 // pred_region
      _
    $region9: #{tpu_custom_call.1} parent=1 // pred_fallthru
      _
    // Predicated region
    $region10: #{tpu_custom_call.1} parent=1 // pred_check
      _
    $region11: #{tpu_custom_call.1} parent=1 // pred_check_branch
      %17 = sbr.rel (0) target = $region13
    $region12: #{tpu_custom_call.1} parent=1 // pred_region
      _
    $region13: #{tpu_custom_call.1} parent=1 // pred_fallthru
      _
    // Predicated region
    $region14: #{tpu_custom_call.1} parent=1 // pred_check
      _
    $region15: #{tpu_custom_call.1} parent=1 // pred_check_branch
      %19 = sbr.rel (0) target = $region17
    $region16: #{tpu_custom_call.1} parent=1 // pred_region
      _
    $region17: #{tpu_custom_call.1} parent=1 // pred_fallthru
      _
    // Predicated region
    $region18: #{tpu_custom_call.1} parent=1 // pred_check
      _
    $region19: #{tpu_custom_call.1} parent=1 // pred_check_branch
      %21 = sbr.rel (0) target = $region21
    $region20: #{tpu_custom_call.1} parent=1 // pred_region
      _
    $region21: #{tpu_custom_call.1} parent=1 // pred_fallthru
      _
    // Predicated region
    $region22: #{tpu_custom_call.1} parent=1 // pred_check
      _
    $region23: #{tpu_custom_call.1} parent=1 // pred_check_branch
      %23 = sbr.rel (0) target = $region25
    $region24: #{tpu_custom_call.1} parent=1 // pred_region
      _
    $region25: #{tpu_custom_call.1} parent=1 // pred_fallthru
      _
    %v25 = vld [vmem:[%s0] sm:$0xf]
    %v26 = vld [vmem:[%s0 + $0x4] sm:$0xf]
    %v27 = vld [vmem:[%s0 + $0x8] sm:$0xf]
    %v28 = vld [vmem:[%s0 + $0xc] sm:$0xf]
    %v29 = vld [vmem:[%s0 + $0x10] sm:$0xf]
    %v30 = vld [vmem:[%s0 + $0x14] sm:$0xf]
    %v31 = vld [vmem:[%s0 + $0x18] sm:$0xf]
    %v32 = vld [vmem:[%s0 + $0x1c] sm:$0xf]
    %v33 = vld [vmem:[%s0 + $0x20] sm:$0xf]
    %v34 = vld [vmem:[%s0 + $0x24] sm:$0xf]
    %v35 = vld [vmem:[%s0 + $0x28] sm:$0xf]
    %v36 = vld [vmem:[%s0 + $0x2c] sm:$0xf]
    %v37 = vld [vmem:[%s0 + $0x30] sm:$0xf]
    %v38 = vld [vmem:[%s0 + $0x34] sm:$0xf]
    %v39 = vld [vmem:[%s0 + $0x38] sm:$0xf]
    %v40 = vld [vmem:[%s0 + $0x3c] sm:$0xf]
    %v41 = vld [vmem:[%s1] sm:$0xf]
    %v42 = vld [vmem:[%s1 + $0x4] sm:$0xf]
    %v43 = vld [vmem:[%s1 + $0x8] sm:$0xf]
    %v44 = vld [vmem:[%s1 + $0xc] sm:$0xf]
    %v45 = vld [vmem:[%s1 + $0x10] sm:$0xf]
    %v46 = vld [vmem:[%s1 + $0x14] sm:$0xf]
    %v47 = vld [vmem:[%s1 + $0x18] sm:$0xf]
    %v48 = vld [vmem:[%s1 + $0x1c] sm:$0xf]
    %v49 = vld [vmem:[%s1 + $0x20] sm:$0xf]
    %v50 = vld [vmem:[%s1 + $0x24] sm:$0xf]
    %v51 = vld [vmem:[%s1 + $0x28] sm:$0xf]
    %v52 = vld [vmem:[%s1 + $0x2c] sm:$0xf]
    %v53 = vld [vmem:[%s1 + $0x30] sm:$0xf]
    %v54 = vld [vmem:[%s1 + $0x34] sm:$0xf]
    %v55 = vld [vmem:[%s1 + $0x38] sm:$0xf]
    %v56 = vld [vmem:[%s1 + $0x3c] sm:$0xf]
    %v73 = vunpack.c.l.b16 %v25
    %v74 = vunpack.c.l.b16 %v26
    %v75 = vunpack.c.l.b16 %v27
    %v76 = vunpack.c.l.b16 %v28
    %v77 = vunpack.c.l.b16 %v29
    %v78 = vunpack.c.l.b16 %v30
    %v79 = vunpack.c.l.b16 %v31
    %v80 = vunpack.c.l.b16 %v32
    %v81 = vunpack.c.l.b16 %v33
    %v82 = vunpack.c.l.b16 %v34
    %v83 = vunpack.c.l.b16 %v35
    %v84 = vunpack.c.l.b16 %v36
    %v85 = vunpack.c.l.b16 %v37
    %v86 = vunpack.c.l.b16 %v38
    %v87 = vunpack.c.l.b16 %v39
    %v88 = vunpack.c.l.b16 %v40
    %v89 = vpack.c.b16 %v74, %v73
    %v90 = vpack.c.b16 %v76, %v75
    %v91 = vpack.c.b16 %v78, %v77
    %v92 = vpack.c.b16 %v80, %v79
    %v93 = vpack.c.b16 %v82, %v81
    %v94 = vpack.c.b16 %v84, %v83
    %v95 = vpack.c.b16 %v86, %v85
    %v96 = vpack.c.b16 %v88, %v87
    %v121 = vunpack.c.l.b16 %v41
    %v122 = vunpack.c.l.b16 %v42
    %v123 = vunpack.c.l.b16 %v43
    %v124 = vunpack.c.l.b16 %v44
    %v125 = vunpack.c.l.b16 %v45
    %v126 = vunpack.c.l.b16 %v46
    %v127 = vunpack.c.l.b16 %v47
    %v128 = vunpack.c.l.b16 %v48
    %v129 = vunpack.c.l.b16 %v49
    %v130 = vunpack.c.l.b16 %v50
    %v131 = vunpack.c.l.b16 %v51
    %v132 = vunpack.c.l.b16 %v52
    %v133 = vunpack.c.l.b16 %v53
    %v134 = vunpack.c.l.b16 %v54
    %v135 = vunpack.c.l.b16 %v55
    %v136 = vunpack.c.l.b16 %v56
    %v137 = vpack.c.b16 %v122, %v121
    %v138 = vpack.c.b16 %v124, %v123
    %v139 = vpack.c.b16 %v126, %v125
    %v140 = vpack.c.b16 %v128, %v127
    %v141 = vpack.c.b16 %v130, %v129
    %v142 = vpack.c.b16 %v132, %v131
    %v143 = vpack.c.b16 %v134, %v133
    %v144 = vpack.c.b16 %v136, %v135
    %153 = vmatprep.subr.bf16.mxu0 0
    %154 = vmatpush1.bf16.msra.mxu0 %v137
    %155 = vmatprep.subr.bf16.mxu0 0
    %156 = vmatpush1.bf16.msra.mxu0 %v138
    %157 = vmatprep.subr.bf16.mxu0 0
    %158 = vmatpush1.bf16.msra.mxu0 %v139
    %159 = vmatprep.subr.bf16.mxu0 0
    %160 = vmatpush1.bf16.msra.mxu0 %v140
    %161 = vmatprep.subr.bf16.mxu0 0
    %162 = vmatpush1.bf16.msra.mxu0 %v141
    %163 = vmatprep.subr.bf16.mxu0 0
    %164 = vmatpush1.bf16.msra.mxu0 %v142
    %165 = vmatprep.subr.bf16.mxu0 0
    %166 = vmatpush1.bf16.msra.mxu0 %v143
    %167 = vmatprep.subr.bf16.mxu0 0
    %168 = vmatpush1.bf16.msra.mxu0 %v144
    %169 = vmatprep.subr.bf16.mxu0 0
    %170 = vmatpush1.bf16.msra.mxu0 0
    %171 = vmatprep.subr.bf16.mxu0 0
    %172 = vmatpush1.bf16.msra.mxu0 0
    %173 = vmatprep.subr.bf16.mxu0 0
    %174 = vmatpush1.bf16.msra.mxu0 0
    %175 = vmatprep.subr.bf16.mxu0 0
    %176 = vmatpush1.bf16.msra.mxu0 0
    %177 = vmatprep.subr.bf16.mxu0 0
    %178 = vmatpush1.bf16.msra.mxu0 0
    %179 = vmatprep.subr.bf16.mxu0 0
    %180 = vmatpush1.bf16.msra.mxu0 0
    %181 = vmatprep.subr.bf16.mxu0 0
    %182 = vmatpush1.bf16.msra.mxu0 0
    %183 = vmatprep.subr.bf16.mxu0 0
    %184 = vmatpush1.bf16.msra.mxu0 0
    %185 = vmatprep.mubr.bf16.mxu0 0
    %186 = vmatmul.mubr.bf16.gmra.mrb[0].mxu0 %v89
    %v187 = vpop.f32.mrb[0].mxu0
    %v188 = vadd.f32 0.0, %v187
    %v189 = vpop.f32.mrb[0].mxu0
    %v190 = vpop.f32.mrb[0].mxu0
    %v191 = vadd.f32 0.0, %v190
    %v192 = vpop.f32.mrb[0].mxu0
    %193 = vmatprep.mubr.bf16.mxu0 0
    %194 = vmatmul.mubr.bf16.gmra.mrb[0].mxu0 %v90
    %v195 = vpop.f32.mrb[0].mxu0
    %v196 = vadd.f32 0.0, %v195
    %v197 = vpop.f32.mrb[0].mxu0
    %v198 = vpop.f32.mrb[0].mxu0
    %v199 = vadd.f32 0.0, %v198
    %v200 = vpop.f32.mrb[0].mxu0
    %201 = vmatprep.mubr.bf16.mxu0 0
    %202 = vmatmul.mubr.bf16.gmra.mrb[0].mxu0 %v91
    %v203 = vpop.f32.mrb[0].mxu0
    %v204 = vadd.f32 0.0, %v203
    %v205 = vpop.f32.mrb[0].mxu0
    %v206 = vpop.f32.mrb[0].mxu0
    %v207 = vadd.f32 0.0, %v206
    %v208 = vpop.f32.mrb[0].mxu0
    %209 = vmatprep.mubr.bf16.mxu0 0
    %210 = vmatmul.mubr.bf16.gmra.mrb[0].mxu0 %v92
    %v211 = vpop.f32.mrb[0].mxu0
    %v212 = vadd.f32 0.0, %v211
    %v213 = vpop.f32.mrb[0].mxu0
    %v214 = vpop.f32.mrb[0].mxu0
    %v215 = vadd.f32 0.0, %v214
    %v216 = vpop.f32.mrb[0].mxu0
    %217 = vmatprep.mubr.bf16.mxu0 0
    %218 = vmatmul.mubr.bf16.gmra.mrb[0].mxu0 %v93
    %v219 = vpop.f32.mrb[0].mxu0
    %v220 = vadd.f32 0.0, %v219
    %v221 = vpop.f32.mrb[0].mxu0
    %v222 = vpop.f32.mrb[0].mxu0
    %v223 = vadd.f32 0.0, %v222
    %v224 = vpop.f32.mrb[0].mxu0
    %225 = vmatprep.mubr.bf16.mxu0 0
    %226 = vmatmul.mubr.bf16.gmra.mrb[0].mxu0 %v94
    %v227 = vpop.f32.mrb[0].mxu0
    %v228 = vadd.f32 0.0, %v227
    %v229 = vpop.f32.mrb[0].mxu0
    %v230 = vpop.f32.mrb[0].mxu0
    %v231 = vadd.f32 0.0, %v230
    %v232 = vpop.f32.mrb[0].mxu0
    %233 = vmatprep.mubr.bf16.mxu0 0
    %234 = vmatmul.mubr.bf16.gmra.mrb[0].mxu0 %v95
    %v235 = vpop.f32.mrb[0].mxu0
    %v236 = vadd.f32 0.0, %v235
    %v237 = vpop.f32.mrb[0].mxu0
    %v238 = vpop.f32.mrb[0].mxu0
    %v239 = vadd.f32 0.0, %v238
    %v240 = vpop.f32.mrb[0].mxu0
    %241 = vmatprep.mubr.bf16.mxu0 0
    %242 = vmatmul.mubr.bf16.gmra.mrb[0].mxu0 %v96
    %v243 = vpop.f32.mrb[0].mxu0
    %v244 = vadd.f32 0.0, %v243
    %v245 = vpop.f32.mrb[0].mxu0
    %v246 = vpop.f32.mrb[0].mxu0
    %v247 = vadd.f32 0.0, %v246
    %v248 = vpop.f32.mrb[0].mxu0
    %249 = vdwg.mxu0
    %s250 = scalar_lea.vmem %s0, 64
    %v251 = vld [vmem:[%s250] sm:$0xf]
    %v252 = vld [vmem:[%s250 + $0x4] sm:$0xf]
    %v253 = vld [vmem:[%s250 + $0x8] sm:$0xf]
    %v254 = vld [vmem:[%s250 + $0xc] sm:$0xf]
    %v255 = vld [vmem:[%s250 + $0x10] sm:$0xf]
    %v256 = vld [vmem:[%s250 + $0x14] sm:$0xf]
    %v257 = vld [vmem:[%s250 + $0x18] sm:$0xf]
    %v258 = vld [vmem:[%s250 + $0x1c] sm:$0xf]
    %v259 = vld [vmem:[%s250 + $0x20] sm:$0xf]
    %v260 = vld [vmem:[%s250 + $0x24] sm:$0xf]
    %v261 = vld [vmem:[%s250 + $0x28] sm:$0xf]
    %v262 = vld [vmem:[%s250 + $0x2c] sm:$0xf]
    %v263 = vld [vmem:[%s250 + $0x30] sm:$0xf]
    %v264 = vld [vmem:[%s250 + $0x34] sm:$0xf]
    %v265 = vld [vmem:[%s250 + $0x38] sm:$0xf]
    %v266 = vld [vmem:[%s250 + $0x3c] sm:$0xf]
    %s267 = scalar_lea.vmem %s1, 64
    %v268 = vld [vmem:[%s267] sm:$0xf]
    %v269 = vld [vmem:[%s267 + $0x4] sm:$0xf]
    %v270 = vld [vmem:[%s267 + $0x8] sm:$0xf]
    %v271 = vld [vmem:[%s267 + $0xc] sm:$0xf]
    %v272 = vld [vmem:[%s267 + $0x10] sm:$0xf]
    %v273 = vld [vmem:[%s267 + $0x14] sm:$0xf]
    %v274 = vld [vmem:[%s267 + $0x18] sm:$0xf]
    %v275 = vld [vmem:[%s267 + $0x1c] sm:$0xf]
    %v276 = vld [vmem:[%s267 + $0x20] sm:$0xf]
    %v277 = vld [vmem:[%s267 + $0x24] sm:$0xf]
    %v278 = vld [vmem:[%s267 + $0x28] sm:$0xf]
    %v279 = vld [vmem:[%s267 + $0x2c] sm:$0xf]
    %v280 = vld [vmem:[%s267 + $0x30] sm:$0xf]
    %v281 = vld [vmem:[%s267 + $0x34] sm:$0xf]
    %v282 = vld [vmem:[%s267 + $0x38] sm:$0xf]
    %v283 = vld [vmem:[%s267 + $0x3c] sm:$0xf]
    %v300 = vunpack.c.l.b16 %v251
    %v301 = vunpack.c.l.b16 %v252
    %v302 = vunpack.c.l.b16 %v253
    %v303 = vunpack.c.l.b16 %v254
    %v304 = vunpack.c.l.b16 %v255
    %v305 = vunpack.c.l.b16 %v256
    %v306 = vunpack.c.l.b16 %v257
    %v307 = vunpack.c.l.b16 %v258
    %v308 = vunpack.c.l.b16 %v259
    %v309 = vunpack.c.l.b16 %v260
    %v310 = vunpack.c.l.b16 %v261
    %v311 = vunpack.c.l.b16 %v262
    %v312 = vunpack.c.l.b16 %v263
    %v313 = vunpack.c.l.b16 %v264
    %v314 = vunpack.c.l.b16 %v265
    %v315 = vunpack.c.l.b16 %v266
    %v316 = vpack.c.b16 %v301, %v300
    %v317 = vpack.c.b16 %v303, %v302
    %v318 = vpack.c.b16 %v305, %v304
    %v319 = vpack.c.b16 %v307, %v306
    %v320 = vpack.c.b16 %v309, %v308
    %v321 = vpack.c.b16 %v311, %v310
    %v322 = vpack.c.b16 %v313, %v312
    %v323 = vpack.c.b16 %v315, %v314
    %v348 = vunpack.c.l.b16 %v268
    %v349 = vunpack.c.l.b16 %v269
    %v350 = vunpack.c.l.b16 %v270
    %v351 = vunpack.c.l.b16 %v271
    %v352 = vunpack.c.l.b16 %v272
    %v353 = vunpack.c.l.b16 %v273
    %v354 = vunpack.c.l.b16 %v274
    %v355 = vunpack.c.l.b16 %v275
    %v356 = vunpack.c.l.b16 %v276
    %v357 = vunpack.c.l.b16 %v277
    %v358 = vunpack.c.l.b16 %v278
    %v359 = vunpack.c.l.b16 %v279
    %v360 = vunpack.c.l.b16 %v280
    %v361 = vunpack.c.l.b16 %v281
    %v362 = vunpack.c.l.b16 %v282
    %v363 = vunpack.c.l.b16 %v283
    %v364 = vpack.c.b16 %v349, %v348
    %v365 = vpack.c.b16 %v351, %v350
    %v366 = vpack.c.b16 %v353, %v352
    %v367 = vpack.c.b16 %v355, %v354
    %v368 = vpack.c.b16 %v357, %v356
    %v369 = vpack.c.b16 %v359, %v358
    %v370 = vpack.c.b16 %v361, %v360
    %v371 = vpack.c.b16 %v363, %v362
    %380 = vmatprep.subr.bf16.mxu0 0
    %381 = vmatpush1.bf16.msra.mxu0 %v364
    %382 = vmatprep.subr.bf16.mxu0 0
    %383 = vmatpush1.bf16.msra.mxu0 %v365
    %384 = vmatprep.subr.bf16.mxu0 0
    %385 = vmatpush1.bf16.msra.mxu0 %v366
    %386 = vmatprep.subr.bf16.mxu0 0
    %387 = vmatpush1.bf16.msra.mxu0 %v367
    %388 = vmatprep.subr.bf16.mxu0 0
    %389 = vmatpush1.bf16.msra.mxu0 %v368
    %390 = vmatprep.subr.bf16.mxu0 0
    %391 = vmatpush1.bf16.msra.mxu0 %v369
    %392 = vmatprep.subr.bf16.mxu0 0
    %393 = vmatpush1.bf16.msra.mxu0 %v370
    %394 = vmatprep.subr.bf16.mxu0 0
    %395 = vmatpush1.bf16.msra.mxu0 %v371
    %396 = vmatprep.subr.bf16.mxu0 0
    %397 = vmatpush1.bf16.msra.mxu0 0
    %398 = vmatprep.subr.bf16.mxu0 0
    %399 = vmatpush1.bf16.msra.mxu0 0
    %400 = vmatprep.subr.bf16.mxu0 0
    %401 = vmatpush1.bf16.msra.mxu0 0
    %402 = vmatprep.subr.bf16.mxu0 0
    %403 = vmatpush1.bf16.msra.mxu0 0
    %404 = vmatprep.subr.bf16.mxu0 0
    %405 = vmatpush1.bf16.msra.mxu0 0
    %406 = vmatprep.subr.bf16.mxu0 0
    %407 = vmatpush1.bf16.msra.mxu0 0
    %408 = vmatprep.subr.bf16.mxu0 0
    %409 = vmatpush1.bf16.msra.mxu0 0
    %410 = vmatprep.subr.bf16.mxu0 0
    %411 = vmatpush1.bf16.msra.mxu0 0
    %412 = vmatprep.mubr.bf16.mxu0 0
    %413 = vmatmul.mubr.bf16.gmra.mrb[0].mxu0 %v316
    %v414 = vpop.f32.mrb[0].mxu0
    %v415 = vadd.f32 0.0, %v414
    %v416 = vpop.f32.mrb[0].mxu0
    %v417 = vpop.f32.mrb[0].mxu0
    %v418 = vadd.f32 0.0, %v417
    %v419 = vpop.f32.mrb[0].mxu0
    %420 = vmatprep.mubr.bf16.mxu0 0
    %421 = vmatmul.mubr.bf16.gmra.mrb[0].mxu0 %v317
    %v422 = vpop.f32.mrb[0].mxu0
    %v423 = vadd.f32 0.0, %v422
    %v424 = vpop.f32.mrb[0].mxu0
    %v425 = vpop.f32.mrb[0].mxu0
    %v426 = vadd.f32 0.0, %v425
    %v427 = vpop.f32.mrb[0].mxu0
    %428 = vmatprep.mubr.bf16.mxu0 0
    %429 = vmatmul.mubr.bf16.gmra.mrb[0].mxu0 %v318
    %v430 = vpop.f32.mrb[0].mxu0
    %v431 = vadd.f32 0.0, %v430
    %v432 = vpop.f32.mrb[0].mxu0
    %v433 = vpop.f32.mrb[0].mxu0
    %v434 = vadd.f32 0.0, %v433
    %v435 = vpop.f32.mrb[0].mxu0
    %436 = vmatprep.mubr.bf16.mxu0 0
    %437 = vmatmul.mubr.bf16.gmra.mrb[0].mxu0 %v319
    %v438 = vpop.f32.mrb[0].mxu0
    %v439 = vadd.f32 0.0, %v438
    %v440 = vpop.f32.mrb[0].mxu0
    %v441 = vpop.f32.mrb[0].mxu0
    %v442 = vadd.f32 0.0, %v441
    %v443 = vpop.f32.mrb[0].mxu0
    %444 = vmatprep.mubr.bf16.mxu0 0
    %445 = vmatmul.mubr.bf16.gmra.mrb[0].mxu0 %v320
    %v446 = vpop.f32.mrb[0].mxu0
    %v447 = vadd.f32 0.0, %v446
    %v448 = vpop.f32.mrb[0].mxu0
    %v449 = vpop.f32.mrb[0].mxu0
    %v450 = vadd.f32 0.0, %v449
    %v451 = vpop.f32.mrb[0].mxu0
    %452 = vmatprep.mubr.bf16.mxu0 0
    %453 = vmatmul.mubr.bf16.gmra.mrb[0].mxu0 %v321
    %v454 = vpop.f32.mrb[0].mxu0
    %v455 = vadd.f32 0.0, %v454
    %v456 = vpop.f32.mrb[0].mxu0
    %v457 = vpop.f32.mrb[0].mxu0
    %v458 = vadd.f32 0.0, %v457
    %v459 = vpop.f32.mrb[0].mxu0
    %460 = vmatprep.mubr.bf16.mxu0 0
    %461 = vmatmul.mubr.bf16.gmra.mrb[0].mxu0 %v322
    %v462 = vpop.f32.mrb[0].mxu0
    %v463 = vadd.f32 0.0, %v462
    %v464 = vpop.f32.mrb[0].mxu0
    %v465 = vpop.f32.mrb[0].mxu0
    %v466 = vadd.f32 0.0, %v465
    %v467 = vpop.f32.mrb[0].mxu0
    %468 = vmatprep.mubr.bf16.mxu0 0
    %469 = vmatmul.mubr.bf16.gmra.mrb[0].mxu0 %v323
    %v470 = vpop.f32.mrb[0].mxu0
    %v471 = vadd.f32 0.0, %v470
    %v472 = vpop.f32.mrb[0].mxu0
    %v473 = vpop.f32.mrb[0].mxu0
    %v474 = vadd.f32 0.0, %v473
    %v475 = vpop.f32.mrb[0].mxu0
    %476 = vdwg.mxu0
    %s477 = scalar_lea.vmem %s0, 128
    %v478 = vld [vmem:[%s477] sm:$0xf]
    %v479 = vld [vmem:[%s477 + $0x4] sm:$0xf]
    %v480 = vld [vmem:[%s477 + $0x8] sm:$0xf]
    %v481 = vld [vmem:[%s477 + $0xc] sm:$0xf]
    %v482 = vld [vmem:[%s477 + $0x10] sm:$0xf]
    %v483 = vld [vmem:[%s477 + $0x14] sm:$0xf]
    %v484 = vld [vmem:[%s477 + $0x18] sm:$0xf]
    %v485 = vld [vmem:[%s477 + $0x1c] sm:$0xf]
    %v486 = vld [vmem:[%s477 + $0x20] sm:$0xf]
    %v487 = vld [vmem:[%s477 + $0x24] sm:$0xf]
    %v488 = vld [vmem:[%s477 + $0x28] sm:$0xf]
    %v489 = vld [vmem:[%s477 + $0x2c] sm:$0xf]
    %v490 = vld [vmem:[%s477 + $0x30] sm:$0xf]
    %v491 = vld [vmem:[%s477 + $0x34] sm:$0xf]
    %v492 = vld [vmem:[%s477 + $0x38] sm:$0xf]
    %v493 = vld [vmem:[%s477 + $0x3c] sm:$0xf]
    %s494 = scalar_lea.vmem %s1, 128
    %v495 = vld [vmem:[%s494] sm:$0xf]
    %v496 = vld [vmem:[%s494 + $0x4] sm:$0xf]
    %v497 = vld [vmem:[%s494 + $0x8] sm:$0xf]
    %v498 = vld [vmem:[%s494 + $0xc] sm:$0xf]
    %v499 = vld [vmem:[%s494 + $0x10] sm:$0xf]
    %v500 = vld [vmem:[%s494 + $0x14] sm:$0xf]
    %v501 = vld [vmem:[%s494 + $0x18] sm:$0xf]
    %v502 = vld [vmem:[%s494 + $0x1c] sm:$0xf]
    %v503 = vld [vmem:[%s494 + $0x20] sm:$0xf]
    %v504 = vld [vmem:[%s494 + $0x24] sm:$0xf]
    %v505 = vld [vmem:[%s494 + $0x28] sm:$0xf]
    %v506 = vld [vmem:[%s494 + $0x2c] sm:$0xf]
    %v507 = vld [vmem:[%s494 + $0x30] sm:$0xf]
    %v508 = vld [vmem:[%s494 + $0x34] sm:$0xf]
    %v509 = vld [vmem:[%s494 + $0x38] sm:$0xf]
    %v510 = vld [vmem:[%s494 + $0x3c] sm:$0xf]
    %v527 = vunpack.c.l.b16 %v478
    %v528 = vunpack.c.l.b16 %v479
    %v529 = vunpack.c.l.b16 %v480
    %v530 = vunpack.c.l.b16 %v481
    %v531 = vunpack.c.l.b16 %v482
    %v532 = vunpack.c.l.b16 %v483
    %v533 = vunpack.c.l.b16 %v484
    %v534 = vunpack.c.l.b16 %v485
    %v535 = vunpack.c.l.b16 %v486
    %v536 = vunpack.c.l.b16 %v487
    %v537 = vunpack.c.l.b16 %v488
    %v538 = vunpack.c.l.b16 %v489
    %v539 = vunpack.c.l.b16 %v490
    %v540 = vunpack.c.l.b16 %v491
    %v541 = vunpack.c.l.b16 %v492
    %v542 = vunpack.c.l.b16 %v493
    %v543 = vpack.c.b16 %v528, %v527
    %v544 = vpack.c.b16 %v530, %v529
    %v545 = vpack.c.b16 %v532, %v531
    %v546 = vpack.c.b16 %v534, %v533
    %v547 = vpack.c.b16 %v536, %v535
    %v548 = vpack.c.b16 %v538, %v537
    %v549 = vpack.c.b16 %v540, %v539
    %v550 = vpack.c.b16 %v542, %v541
    %v575 = vunpack.c.l.b16 %v495
    %v576 = vunpack.c.l.b16 %v496
    %v577 = vunpack.c.l.b16 %v497
    %v578 = vunpack.c.l.b16 %v498
    %v579 = vunpack.c.l.b16 %v499
    %v580 = vunpack.c.l.b16 %v500
    %v581 = vunpack.c.l.b16 %v501
    %v582 = vunpack.c.l.b16 %v502
    %v583 = vunpack.c.l.b16 %v503
    %v584 = vunpack.c.l.b16 %v504
    %v585 = vunpack.c.l.b16 %v505
    %v586 = vunpack.c.l.b16 %v506
    %v587 = vunpack.c.l.b16 %v507
    %v588 = vunpack.c.l.b16 %v508
    %v589 = vunpack.c.l.b16 %v509
    %v590 = vunpack.c.l.b16 %v510
    %v591 = vpack.c.b16 %v576, %v575
    %v592 = vpack.c.b16 %v578, %v577
    %v593 = vpack.c.b16 %v580, %v579
    %v594 = vpack.c.b16 %v582, %v581
    %v595 = vpack.c.b16 %v584, %v583
    %v596 = vpack.c.b16 %v586, %v585
    %v597 = vpack.c.b16 %v588, %v587
    %v598 = vpack.c.b16 %v590, %v589
    %607 = vmatprep.subr.bf16.mxu0 0
    %608 = vmatpush1.bf16.msra.mxu0 %v591
    %609 = vmatprep.subr.bf16.mxu0 0
    %610 = vmatpush1.bf16.msra.mxu0 %v592
    %611 = vmatprep.subr.bf16.mxu0 0
    %612 = vmatpush1.bf16.msra.mxu0 %v593
    %613 = vmatprep.subr.bf16.mxu0 0
    %614 = vmatpush1.bf16.msra.mxu0 %v594
    %615 = vmatprep.subr.bf16.mxu0 0
    %616 = vmatpush1.bf16.msra.mxu0 %v595
    %617 = vmatprep.subr.bf16.mxu0 0
    %618 = vmatpush1.bf16.msra.mxu0 %v596
    %619 = vmatprep.subr.bf16.mxu0 0
    %620 = vmatpush1.bf16.msra.mxu0 %v597
    %621 = vmatprep.subr.bf16.mxu0 0
    %622 = vmatpush1.bf16.msra.mxu0 %v598
    %623 = vmatprep.subr.bf16.mxu0 0
    %624 = vmatpush1.bf16.msra.mxu0 0
    %625 = vmatprep.subr.bf16.mxu0 0
    %626 = vmatpush1.bf16.msra.mxu0 0
    %627 = vmatprep.subr.bf16.mxu0 0
    %628 = vmatpush1.bf16.msra.mxu0 0
    %629 = vmatprep.subr.bf16.mxu0 0
    %630 = vmatpush1.bf16.msra.mxu0 0
    %631 = vmatprep.subr.bf16.mxu0 0
    %632 = vmatpush1.bf16.msra.mxu0 0
    %633 = vmatprep.subr.bf16.mxu0 0
    %634 = vmatpush1.bf16.msra.mxu0 0
    %635 = vmatprep.subr.bf16.mxu0 0
    %636 = vmatpush1.bf16.msra.mxu0 0
    %637 = vmatprep.subr.bf16.mxu0 0
    %638 = vmatpush1.bf16.msra.mxu0 0
    %639 = vmatprep.mubr.bf16.mxu0 0
    %640 = vmatmul.mubr.bf16.gmra.mrb[0].mxu0 %v543
    %v641 = vpop.f32.mrb[0].mxu0
    %v642 = vadd.f32 0.0, %v641
    %v643 = vpop.f32.mrb[0].mxu0
    %v644 = vpop.f32.mrb[0].mxu0
    %v645 = vadd.f32 0.0, %v644
    %v646 = vpop.f32.mrb[0].mxu0
    %647 = vmatprep.mubr.bf16.mxu0 0
    %648 = vmatmul.mubr.bf16.gmra.mrb[0].mxu0 %v544
    %v649 = vpop.f32.mrb[0].mxu0
    %v650 = vadd.f32 0.0, %v649
    %v651 = vpop.f32.mrb[0].mxu0
    %v652 = vpop.f32.mrb[0].mxu0
    %v653 = vadd.f32 0.0, %v652
    %v654 = vpop.f32.mrb[0].mxu0
    %655 = vmatprep.mubr.bf16.mxu0 0
    %656 = vmatmul.mubr.bf16.gmra.mrb[0].mxu0 %v545
    %v657 = vpop.f32.mrb[0].mxu0
    %v658 = vadd.f32 0.0, %v657
    %v659 = vpop.f32.mrb[0].mxu0
    %v660 = vpop.f32.mrb[0].mxu0
    %v661 = vadd.f32 0.0, %v660
    %v662 = vpop.f32.mrb[0].mxu0
    %663 = vmatprep.mubr.bf16.mxu0 0
    %664 = vmatmul.mubr.bf16.gmra.mrb[0].mxu0 %v546
    %v665 = vpop.f32.mrb[0].mxu0
    %v666 = vadd.f32 0.0, %v665
    %v667 = vpop.f32.mrb[0].mxu0
    %v668 = vpop.f32.mrb[0].mxu0
    %v669 = vadd.f32 0.0, %v668
    %v670 = vpop.f32.mrb[0].mxu0
    %671 = vmatprep.mubr.bf16.mxu0 0
    %672 = vmatmul.mubr.bf16.gmra.mrb[0].mxu0 %v547
    %v673 = vpop.f32.mrb[0].mxu0
    %v674 = vadd.f32 0.0, %v673
    %v675 = vpop.f32.mrb[0].mxu0
    %v676 = vpop.f32.mrb[0].mxu0
    %v677 = vadd.f32 0.0, %v676
    %v678 = vpop.f32.mrb[0].mxu0
    %679 = vmatprep.mubr.bf16.mxu0 0
    %680 = vmatmul.mubr.bf16.gmra.mrb[0].mxu0 %v548
    %v681 = vpop.f32.mrb[0].mxu0
    %v682 = vadd.f32 0.0, %v681
    %v683 = vpop.f32.mrb[0].mxu0
    %v684 = vpop.f32.mrb[0].mxu0
    %v685 = vadd.f32 0.0, %v684
    %v686 = vpop.f32.mrb[0].mxu0
    %687 = vmatprep.mubr.bf16.mxu0 0
    %688 = vmatmul.mubr.bf16.gmra.mrb[0].mxu0 %v549
    %v689 = vpop.f32.mrb[0].mxu0
    %v690 = vadd.f32 0.0, %v689
    %v691 = vpop.f32.mrb[0].mxu0
    %v692 = vpop.f32.mrb[0].mxu0
    %v693 = vadd.f32 0.0, %v692
    %v694 = vpop.f32.mrb[0].mxu0
    %695 = vmatprep.mubr.bf16.mxu0 0
    %696 = vmatmul.mubr.bf16.gmra.mrb[0].mxu0 %v550
    %v697 = vpop.f32.mrb[0].mxu0
    %v698 = vadd.f32 0.0, %v697
    %v699 = vpop.f32.mrb[0].mxu0
    %v700 = vpop.f32.mrb[0].mxu0
    %v701 = vadd.f32 0.0, %v700
    %v702 = vpop.f32.mrb[0].mxu0
    %703 = vdwg.mxu0
    %s704 = scalar_lea.vmem %s0, 192
    %v705 = vld [vmem:[%s704] sm:$0xf]
    %v706 = vld [vmem:[%s704 + $0x4] sm:$0xf]
    %v707 = vld [vmem:[%s704 + $0x8] sm:$0xf]
    %v708 = vld [vmem:[%s704 + $0xc] sm:$0xf]
    %v709 = vld [vmem:[%s704 + $0x10] sm:$0xf]
    %v710 = vld [vmem:[%s704 + $0x14] sm:$0xf]
    %v711 = vld [vmem:[%s704 + $0x18] sm:$0xf]
    %v712 = vld [vmem:[%s704 + $0x1c] sm:$0xf]
    %v713 = vld [vmem:[%s704 + $0x20] sm:$0xf]
    %v714 = vld [vmem:[%s704 + $0x24] sm:$0xf]
    %v715 = vld [vmem:[%s704 + $0x28] sm:$0xf]
    %v716 = vld [vmem:[%s704 + $0x2c] sm:$0xf]
    %v717 = vld [vmem:[%s704 + $0x30] sm:$0xf]
    %v718 = vld [vmem:[%s704 + $0x34] sm:$0xf]
    %v719 = vld [vmem:[%s704 + $0x38] sm:$0xf]
    %v720 = vld [vmem:[%s704 + $0x3c] sm:$0xf]
    %s721 = scalar_lea.vmem %s1, 192
    %v722 = vld [vmem:[%s721] sm:$0xf]
    %v723 = vld [vmem:[%s721 + $0x4] sm:$0xf]
    %v724 = vld [vmem:[%s721 + $0x8] sm:$0xf]
    %v725 = vld [vmem:[%s721 + $0xc] sm:$0xf]
    %v726 = vld [vmem:[%s721 + $0x10] sm:$0xf]
    %v727 = vld [vmem:[%s721 + $0x14] sm:$0xf]
    %v728 = vld [vmem:[%s721 + $0x18] sm:$0xf]
    %v729 = vld [vmem:[%s721 + $0x1c] sm:$0xf]
    %v730 = vld [vmem:[%s721 + $0x20] sm:$0xf]
    %v731 = vld [vmem:[%s721 + $0x24] sm:$0xf]
    %v732 = vld [vmem:[%s721 + $0x28] sm:$0xf]
    %v733 = vld [vmem:[%s721 + $0x2c] sm:$0xf]
    %v734 = vld [vmem:[%s721 + $0x30] sm:$0xf]
    %v735 = vld [vmem:[%s721 + $0x34] sm:$0xf]
    %v736 = vld [vmem:[%s721 + $0x38] sm:$0xf]
    %v737 = vld [vmem:[%s721 + $0x3c] sm:$0xf]
    %v754 = vunpack.c.l.b16 %v705
    %v755 = vunpack.c.l.b16 %v706
    %v756 = vunpack.c.l.b16 %v707
    %v757 = vunpack.c.l.b16 %v708
    %v758 = vunpack.c.l.b16 %v709
    %v759 = vunpack.c.l.b16 %v710
    %v760 = vunpack.c.l.b16 %v711
    %v761 = vunpack.c.l.b16 %v712
    %v762 = vunpack.c.l.b16 %v713
    %v763 = vunpack.c.l.b16 %v714
    %v764 = vunpack.c.l.b16 %v715
    %v765 = vunpack.c.l.b16 %v716
    %v766 = vunpack.c.l.b16 %v717
    %v767 = vunpack.c.l.b16 %v718
    %v768 = vunpack.c.l.b16 %v719
    %v769 = vunpack.c.l.b16 %v720
    %v770 = vpack.c.b16 %v755, %v754
    %v771 = vpack.c.b16 %v757, %v756
    %v772 = vpack.c.b16 %v759, %v758
    %v773 = vpack.c.b16 %v761, %v760
    %v774 = vpack.c.b16 %v763, %v762
    %v775 = vpack.c.b16 %v765, %v764
    %v776 = vpack.c.b16 %v767, %v766
    %v777 = vpack.c.b16 %v769, %v768
    %v802 = vunpack.c.l.b16 %v722
    %v803 = vunpack.c.l.b16 %v723
    %v804 = vunpack.c.l.b16 %v724
    %v805 = vunpack.c.l.b16 %v725
    %v806 = vunpack.c.l.b16 %v726
    %v807 = vunpack.c.l.b16 %v727
    %v808 = vunpack.c.l.b16 %v728
    %v809 = vunpack.c.l.b16 %v729
    %v810 = vunpack.c.l.b16 %v730
    %v811 = vunpack.c.l.b16 %v731
    %v812 = vunpack.c.l.b16 %v732
    %v813 = vunpack.c.l.b16 %v733
    %v814 = vunpack.c.l.b16 %v734
    %v815 = vunpack.c.l.b16 %v735
    %v816 = vunpack.c.l.b16 %v736
    %v817 = vunpack.c.l.b16 %v737
    %v818 = vpack.c.b16 %v803, %v802
    %v819 = vpack.c.b16 %v805, %v804
    %v820 = vpack.c.b16 %v807, %v806
    %v821 = vpack.c.b16 %v809, %v808
    %v822 = vpack.c.b16 %v811, %v810
    %v823 = vpack.c.b16 %v813, %v812
    %v824 = vpack.c.b16 %v815, %v814
    %v825 = vpack.c.b16 %v817, %v816
    %834 = vmatprep.subr.bf16.mxu0 0
    %835 = vmatpush1.bf16.msra.mxu0 %v818
    %836 = vmatprep.subr.bf16.mxu0 0
    %837 = vmatpush1.bf16.msra.mxu0 %v819
    %838 = vmatprep.subr.bf16.mxu0 0
    %839 = vmatpush1.bf16.msra.mxu0 %v820
    %840 = vmatprep.subr.bf16.mxu0 0
    %841 = vmatpush1.bf16.msra.mxu0 %v821
    %842 = vmatprep.subr.bf16.mxu0 0
    %843 = vmatpush1.bf16.msra.mxu0 %v822
    %844 = vmatprep.subr.bf16.mxu0 0
    %845 = vmatpush1.bf16.msra.mxu0 %v823
    %846 = vmatprep.subr.bf16.mxu0 0
    %847 = vmatpush1.bf16.msra.mxu0 %v824
    %848 = vmatprep.subr.bf16.mxu0 0
    %849 = vmatpush1.bf16.msra.mxu0 %v825
    %850 = vmatprep.subr.bf16.mxu0 0
    %851 = vmatpush1.bf16.msra.mxu0 0
    %852 = vmatprep.subr.bf16.mxu0 0
    %853 = vmatpush1.bf16.msra.mxu0 0
    %854 = vmatprep.subr.bf16.mxu0 0
    %855 = vmatpush1.bf16.msra.mxu0 0
    %856 = vmatprep.subr.bf16.mxu0 0
    %857 = vmatpush1.bf16.msra.mxu0 0
    %858 = vmatprep.subr.bf16.mxu0 0
    %859 = vmatpush1.bf16.msra.mxu0 0
    %860 = vmatprep.subr.bf16.mxu0 0
    %861 = vmatpush1.bf16.msra.mxu0 0
    %862 = vmatprep.subr.bf16.mxu0 0
    %863 = vmatpush1.bf16.msra.mxu0 0
    %864 = vmatprep.subr.bf16.mxu0 0
    %865 = vmatpush1.bf16.msra.mxu0 0
    %866 = vmatprep.mubr.bf16.mxu0 0
    %867 = vmatmul.mubr.bf16.gmra.mrb[0].mxu0 %v770
    %v868 = vpop.f32.mrb[0].mxu0
    %v869 = vadd.f32 0.0, %v868
    %v870 = vpop.f32.mrb[0].mxu0
    %v871 = vpop.f32.mrb[0].mxu0
    %v872 = vadd.f32 0.0, %v871
    %v873 = vpop.f32.mrb[0].mxu0
    %874 = vmatprep.mubr.bf16.mxu0 0
    %875 = vmatmul.mubr.bf16.gmra.mrb[0].mxu0 %v771
    %v876 = vpop.f32.mrb[0].mxu0
    %v877 = vadd.f32 0.0, %v876
    %v878 = vpop.f32.mrb[0].mxu0
    %v879 = vpop.f32.mrb[0].mxu0
    %v880 = vadd.f32 0.0, %v879
    %v881 = vpop.f32.mrb[0].mxu0
    %882 = vmatprep.mubr.bf16.mxu0 0
    %883 = vmatmul.mubr.bf16.gmra.mrb[0].mxu0 %v772
    %v884 = vpop.f32.mrb[0].mxu0
    %v885 = vadd.f32 0.0, %v884
    %v886 = vpop.f32.mrb[0].mxu0
    %v887 = vpop.f32.mrb[0].mxu0
    %v888 = vadd.f32 0.0, %v887
    %v889 = vpop.f32.mrb[0].mxu0
    %890 = vmatprep.mubr.bf16.mxu0 0
    %891 = vmatmul.mubr.bf16.gmra.mrb[0].mxu0 %v773
    %v892 = vpop.f32.mrb[0].mxu0
    %v893 = vadd.f32 0.0, %v892
    %v894 = vpop.f32.mrb[0].mxu0
    %v895 = vpop.f32.mrb[0].mxu0
    %v896 = vadd.f32 0.0, %v895
    %v897 = vpop.f32.mrb[0].mxu0
    %898 = vmatprep.mubr.bf16.mxu0 0
    %899 = vmatmul.mubr.bf16.gmra.mrb[0].mxu0 %v774
    %v900 = vpop.f32.mrb[0].mxu0
    %v901 = vadd.f32 0.0, %v900
    %v902 = vpop.f32.mrb[0].mxu0
    %v903 = vpop.f32.mrb[0].mxu0
    %v904 = vadd.f32 0.0, %v903
    %v905 = vpop.f32.mrb[0].mxu0
    %906 = vmatprep.mubr.bf16.mxu0 0
    %907 = vmatmul.mubr.bf16.gmra.mrb[0].mxu0 %v775
    %v908 = vpop.f32.mrb[0].mxu0
    %v909 = vadd.f32 0.0, %v908
    %v910 = vpop.f32.mrb[0].mxu0
    %v911 = vpop.f32.mrb[0].mxu0
    %v912 = vadd.f32 0.0, %v911
    %v913 = vpop.f32.mrb[0].mxu0
    %914 = vmatprep.mubr.bf16.mxu0 0
    %915 = vmatmul.mubr.bf16.gmra.mrb[0].mxu0 %v776
    %v916 = vpop.f32.mrb[0].mxu0
    %v917 = vadd.f32 0.0, %v916
    %v918 = vpop.f32.mrb[0].mxu0
    %v919 = vpop.f32.mrb[0].mxu0
    %v920 = vadd.f32 0.0, %v919
    %v921 = vpop.f32.mrb[0].mxu0
    %922 = vmatprep.mubr.bf16.mxu0 0
    %923 = vmatmul.mubr.bf16.gmra.mrb[0].mxu0 %v777
    %v924 = vpop.f32.mrb[0].mxu0
    %v925 = vadd.f32 0.0, %v924
    %v926 = vpop.f32.mrb[0].mxu0
    %v927 = vpop.f32.mrb[0].mxu0
    %v928 = vadd.f32 0.0, %v927
    %v929 = vpop.f32.mrb[0].mxu0
    %930 = vdwg.mxu0
    %v931 = vpack.c.bf16 %v191, %v188
    %v932 = vpack.c.bf16 %v199, %v196
    %v933 = vpack.c.bf16 %v207, %v204
    %v934 = vpack.c.bf16 %v215, %v212
    %v935 = vpack.c.bf16 %v223, %v220
    %v936 = vpack.c.bf16 %v231, %v228
    %v937 = vpack.c.bf16 %v239, %v236
    %v938 = vpack.c.bf16 %v247, %v244
    %v939 = vpack.c.bf16 %v418, %v415
    %v940 = vpack.c.bf16 %v426, %v423
    %v941 = vpack.c.bf16 %v434, %v431
    %v942 = vpack.c.bf16 %v442, %v439
    %v943 = vpack.c.bf16 %v450, %v447
    %v944 = vpack.c.bf16 %v458, %v455
    %v945 = vpack.c.bf16 %v466, %v463
    %v946 = vpack.c.bf16 %v474, %v471
    %v947 = vpack.c.bf16 %v645, %v642
    %v948 = vpack.c.bf16 %v653, %v650
    %v949 = vpack.c.bf16 %v661, %v658
    %v950 = vpack.c.bf16 %v669, %v666
    %v951 = vpack.c.bf16 %v677, %v674
    %v952 = vpack.c.bf16 %v685, %v682
    %v953 = vpack.c.bf16 %v693, %v690
    %v954 = vpack.c.bf16 %v701, %v698
    %v955 = vpack.c.bf16 %v872, %v869
    %v956 = vpack.c.bf16 %v880, %v877
    %v957 = vpack.c.bf16 %v888, %v885
    %v958 = vpack.c.bf16 %v896, %v893
    %v959 = vpack.c.bf16 %v904, %v901
    %v960 = vpack.c.bf16 %v912, %v909
    %v961 = vpack.c.bf16 %v920, %v917
    %v962 = vpack.c.bf16 %v928, %v925
    %v963 = vld [vmem:[%s2] sm:$0xf]
    %v964 = vld [vmem:[%s2 + $0x4] sm:$0x1]
    %v965 = vld [vmem:[%s3] sm:$0x1]
    %v967 = vlaneseq
    %v968 = vshrl.u32 %v967, 7
    %v969 = vsub.s32 0, %v968
    %v970 = vrot.slane %v965, %v969
    %v974 = vunpack.c.l.b16 %v963
    %v975 = vunpack.c.l.b16 %v964
    %v976 = vpack.c.b16 %v975, %v974
    %vm977 = vcmask 72704
    %v979 = vsel %vm977, %v931, 0
    %v982 = vsel %vm977, %v932, 0
    %v985 = vsel %vm977, %v933, 0
    %v988 = vsel %vm977, %v934, 0
    %v991 = vsel %vm977, %v935, 0
    %v994 = vsel %vm977, %v936, 0
    %v997 = vsel %vm977, %v937, 0
    %v1000 = vsel %vm977, %v938, 0
    %v1003 = vsel %vm977, %v939, 0
    %v1006 = vsel %vm977, %v940, 0
    %v1009 = vsel %vm977, %v941, 0
    %v1012 = vsel %vm977, %v942, 0
    %v1015 = vsel %vm977, %v943, 0
    %v1018 = vsel %vm977, %v944, 0
    %v1021 = vsel %vm977, %v945, 0
    %v1024 = vsel %vm977, %v946, 0
    %v1027 = vsel %vm977, %v947, 0
    %v1030 = vsel %vm977, %v948, 0
    %v1033 = vsel %vm977, %v949, 0
    %v1036 = vsel %vm977, %v950, 0
    %v1039 = vsel %vm977, %v951, 0
    %v1042 = vsel %vm977, %v952, 0
    %v1045 = vsel %vm977, %v953, 0
    %v1048 = vsel %vm977, %v954, 0
    %v1051 = vsel %vm977, %v955, 0
    %v1054 = vsel %vm977, %v956, 0
    %v1057 = vsel %vm977, %v957, 0
    %v1060 = vsel %vm977, %v958, 0
    %v1063 = vsel %vm977, %v959, 0
    %v1066 = vsel %vm977, %v960, 0
    %v1069 = vsel %vm977, %v961, 0
    %v1072 = vsel %vm977, %v962, 0
    %vm1074 = vcmask 1043456
    %vm1075 = vcmask 1044480
    %v1076 = vsel %vm1074, 4294967295, 65535
    %v1077 = vsel %vm1075, %v1076, 0
    %v1079 = vand.u32 %v976, %v1077
    %1081 = vmatprep.subr.bf16.mxu0 0
    %1082 = vmatpush1.bf16.msra.mxu0 %v1079
    %1083 = vmatprep.subr.bf16.mxu0 0
    %1084 = vmatpush1.bf16.msra.mxu0 0
    %1085 = vmatprep.subr.bf16.mxu0 0
    %1086 = vmatpush1.bf16.msra.mxu0 0
    %1087 = vmatprep.subr.bf16.mxu0 0
    %1088 = vmatpush1.bf16.msra.mxu0 0
    %1089 = vmatprep.subr.bf16.mxu0 0
    %1090 = vmatpush1.bf16.msra.mxu0 0
    %1091 = vmatprep.subr.bf16.mxu0 0
    %1092 = vmatpush1.bf16.msra.mxu0 0
    %1093 = vmatprep.subr.bf16.mxu0 0
    %1094 = vmatpush1.bf16.msra.mxu0 0
    %1095 = vmatprep.subr.bf16.mxu0 0
    %1096 = vmatpush1.bf16.msra.mxu0 0
    %1097 = vmatprep.subr.bf16.mxu0 0
    %1098 = vmatpush1.bf16.msra.mxu0 0
    %1099 = vmatprep.subr.bf16.mxu0 0
    %1100 = vmatpush1.bf16.msra.mxu0 0
    %1101 = vmatprep.subr.bf16.mxu0 0
    %1102 = vmatpush1.bf16.msra.mxu0 0
    %1103 = vmatprep.subr.bf16.mxu0 0
    %1104 = vmatpush1.bf16.msra.mxu0 0
    %1105 = vmatprep.subr.bf16.mxu0 0
    %1106 = vmatpush1.bf16.msra.mxu0 0
    %1107 = vmatprep.subr.bf16.mxu0 0
    %1108 = vmatpush1.bf16.msra.mxu0 0
    %1109 = vmatprep.subr.bf16.mxu0 0
    %1110 = vmatpush1.bf16.msra.mxu0 0
    %1111 = vmatprep.subr.bf16.mxu0 0
    %1112 = vmatpush1.bf16.msra.mxu0 0
    %1113 = vmatprep.mubr.bf16.mxu0 0
    %1114 = vmatmul.mubr.bf16.gmra.mrb[0].mxu0 %v979
    %v1115 = vpop.f32.mrb[0].mxu0
    %v1116 = vadd.f32 %v970, %v1115
    %v1117 = vpop.f32.mrb[0].mxu0
    %v1118 = vpop.f32.mrb[0].mxu0
    %v1119 = vadd.f32 %v970, %v1118
    %v1120 = vpop.f32.mrb[0].mxu0
    %1121 = vmatprep.mubr.bf16.mxu0 0
    %1122 = vmatmul.mubr.bf16.gmra.mrb[0].mxu0 %v982
    %v1123 = vpop.f32.mrb[0].mxu0
    %v1124 = vadd.f32 %v970, %v1123
    %v1125 = vpop.f32.mrb[0].mxu0
    %v1126 = vpop.f32.mrb[0].mxu0
    %v1127 = vadd.f32 %v970, %v1126
    %v1128 = vpop.f32.mrb[0].mxu0
    %1129 = vmatprep.mubr.bf16.mxu0 0
    %1130 = vmatmul.mubr.bf16.gmra.mrb[0].mxu0 %v985
    %v1131 = vpop.f32.mrb[0].mxu0
    %v1132 = vadd.f32 %v970, %v1131
    %v1133 = vpop.f32.mrb[0].mxu0
    %v1134 = vpop.f32.mrb[0].mxu0
    %v1135 = vadd.f32 %v970, %v1134
    %v1136 = vpop.f32.mrb[0].mxu0
    %1137 = vmatprep.mubr.bf16.mxu0 0
    %1138 = vmatmul.mubr.bf16.gmra.mrb[0].mxu0 %v988
    %v1139 = vpop.f32.mrb[0].mxu0
    %v1140 = vadd.f32 %v970, %v1139
    %v1141 = vpop.f32.mrb[0].mxu0
    %v1142 = vpop.f32.mrb[0].mxu0
    %v1143 = vadd.f32 %v970, %v1142
    %v1144 = vpop.f32.mrb[0].mxu0
    %1145 = vmatprep.mubr.bf16.mxu0 0
    %1146 = vmatmul.mubr.bf16.gmra.mrb[0].mxu0 %v991
    %v1147 = vpop.f32.mrb[0].mxu0
    %v1148 = vadd.f32 %v970, %v1147
    %v1149 = vpop.f32.mrb[0].mxu0
    %v1150 = vpop.f32.mrb[0].mxu0
    %v1151 = vadd.f32 %v970, %v1150
    %v1152 = vpop.f32.mrb[0].mxu0
    %1153 = vmatprep.mubr.bf16.mxu0 0
    %1154 = vmatmul.mubr.bf16.gmra.mrb[0].mxu0 %v994
    %v1155 = vpop.f32.mrb[0].mxu0
    %v1156 = vadd.f32 %v970, %v1155
    %v1157 = vpop.f32.mrb[0].mxu0
    %v1158 = vpop.f32.mrb[0].mxu0
    %v1159 = vadd.f32 %v970, %v1158
    %v1160 = vpop.f32.mrb[0].mxu0
    %1161 = vmatprep.mubr.bf16.mxu0 0
    %1162 = vmatmul.mubr.bf16.gmra.mrb[0].mxu0 %v997
    %v1163 = vpop.f32.mrb[0].mxu0
    %v1164 = vadd.f32 %v970, %v1163
    %v1165 = vpop.f32.mrb[0].mxu0
    %v1166 = vpop.f32.mrb[0].mxu0
    %v1167 = vadd.f32 %v970, %v1166
    %v1168 = vpop.f32.mrb[0].mxu0
    %1169 = vmatprep.mubr.bf16.mxu0 0
    %1170 = vmatmul.mubr.bf16.gmra.mrb[0].mxu0 %v1000
    %v1171 = vpop.f32.mrb[0].mxu0
    %v1172 = vadd.f32 %v970, %v1171
    %v1173 = vpop.f32.mrb[0].mxu0
    %v1174 = vpop.f32.mrb[0].mxu0
    %v1175 = vadd.f32 %v970, %v1174
    %v1176 = vpop.f32.mrb[0].mxu0
    %1177 = vmatprep.mubr.bf16.mxu0 0
    %1178 = vmatmul.mubr.bf16.gmra.mrb[0].mxu0 %v1003
    %v1179 = vpop.f32.mrb[0].mxu0
    %v1180 = vadd.f32 %v970, %v1179
    %v1181 = vpop.f32.mrb[0].mxu0
    %v1182 = vpop.f32.mrb[0].mxu0
    %v1183 = vadd.f32 %v970, %v1182
    %v1184 = vpop.f32.mrb[0].mxu0
    %1185 = vmatprep.mubr.bf16.mxu0 0
    %1186 = vmatmul.mubr.bf16.gmra.mrb[0].mxu0 %v1006
    %v1187 = vpop.f32.mrb[0].mxu0
    %v1188 = vadd.f32 %v970, %v1187
    %v1189 = vpop.f32.mrb[0].mxu0
    %v1190 = vpop.f32.mrb[0].mxu0
    %v1191 = vadd.f32 %v970, %v1190
    %v1192 = vpop.f32.mrb[0].mxu0
    %1193 = vmatprep.mubr.bf16.mxu0 0
    %1194 = vmatmul.mubr.bf16.gmra.mrb[0].mxu0 %v1009
    %v1195 = vpop.f32.mrb[0].mxu0
    %v1196 = vadd.f32 %v970, %v1195
    %v1197 = vpop.f32.mrb[0].mxu0
    %v1198 = vpop.f32.mrb[0].mxu0
    %v1199 = vadd.f32 %v970, %v1198
    %v1200 = vpop.f32.mrb[0].mxu0
    %1201 = vmatprep.mubr.bf16.mxu0 0
    %1202 = vmatmul.mubr.bf16.gmra.mrb[0].mxu0 %v1012
    %v1203 = vpop.f32.mrb[0].mxu0
    %v1204 = vadd.f32 %v970, %v1203
    %v1205 = vpop.f32.mrb[0].mxu0
    %v1206 = vpop.f32.mrb[0].mxu0
    %v1207 = vadd.f32 %v970, %v1206
    %v1208 = vpop.f32.mrb[0].mxu0
    %1209 = vmatprep.mubr.bf16.mxu0 0
    %1210 = vmatmul.mubr.bf16.gmra.mrb[0].mxu0 %v1015
    %v1211 = vpop.f32.mrb[0].mxu0
    %v1212 = vadd.f32 %v970, %v1211
    %v1213 = vpop.f32.mrb[0].mxu0
    %v1214 = vpop.f32.mrb[0].mxu0
    %v1215 = vadd.f32 %v970, %v1214
    %v1216 = vpop.f32.mrb[0].mxu0
    %1217 = vmatprep.mubr.bf16.mxu0 0
    %1218 = vmatmul.mubr.bf16.gmra.mrb[0].mxu0 %v1018
    %v1219 = vpop.f32.mrb[0].mxu0
    %v1220 = vadd.f32 %v970, %v1219
    %v1221 = vpop.f32.mrb[0].mxu0
    %v1222 = vpop.f32.mrb[0].mxu0
    %v1223 = vadd.f32 %v970, %v1222
    %v1224 = vpop.f32.mrb[0].mxu0
    %1225 = vmatprep.mubr.bf16.mxu0 0
    %1226 = vmatmul.mubr.bf16.gmra.mrb[0].mxu0 %v1021
    %v1227 = vpop.f32.mrb[0].mxu0
    %v1228 = vadd.f32 %v970, %v1227
    %v1229 = vpop.f32.mrb[0].mxu0
    %v1230 = vpop.f32.mrb[0].mxu0
    %v1231 = vadd.f32 %v970, %v1230
    %v1232 = vpop.f32.mrb[0].mxu0
    %1233 = vmatprep.mubr.bf16.mxu0 0
    %1234 = vmatmul.mubr.bf16.gmra.mrb[0].mxu0 %v1024
    %v1235 = vpop.f32.mrb[0].mxu0
    %v1236 = vadd.f32 %v970, %v1235
    %v1237 = vpop.f32.mrb[0].mxu0
    %v1238 = vpop.f32.mrb[0].mxu0
    %v1239 = vadd.f32 %v970, %v1238
    %v1240 = vpop.f32.mrb[0].mxu0
    %1241 = vmatprep.mubr.bf16.mxu0 0
    %1242 = vmatmul.mubr.bf16.gmra.mrb[0].mxu0 %v1027
    %v1243 = vpop.f32.mrb[0].mxu0
    %v1244 = vadd.f32 %v970, %v1243
    %v1245 = vpop.f32.mrb[0].mxu0
    %v1246 = vpop.f32.mrb[0].mxu0
    %v1247 = vadd.f32 %v970, %v1246
    %v1248 = vpop.f32.mrb[0].mxu0
    %1249 = vmatprep.mubr.bf16.mxu0 0
    %1250 = vmatmul.mubr.bf16.gmra.mrb[0].mxu0 %v1030
    %v1251 = vpop.f32.mrb[0].mxu0
    %v1252 = vadd.f32 %v970, %v1251
    %v1253 = vpop.f32.mrb[0].mxu0
    %v1254 = vpop.f32.mrb[0].mxu0
    %v1255 = vadd.f32 %v970, %v1254
    %v1256 = vpop.f32.mrb[0].mxu0
    %1257 = vmatprep.mubr.bf16.mxu0 0
    %1258 = vmatmul.mubr.bf16.gmra.mrb[0].mxu0 %v1033
    %v1259 = vpop.f32.mrb[0].mxu0
    %v1260 = vadd.f32 %v970, %v1259
    %v1261 = vpop.f32.mrb[0].mxu0
    %v1262 = vpop.f32.mrb[0].mxu0
    %v1263 = vadd.f32 %v970, %v1262
    %v1264 = vpop.f32.mrb[0].mxu0
    %1265 = vmatprep.mubr.bf16.mxu0 0
    %1266 = vmatmul.mubr.bf16.gmra.mrb[0].mxu0 %v1036
    %v1267 = vpop.f32.mrb[0].mxu0
    %v1268 = vadd.f32 %v970, %v1267
    %v1269 = vpop.f32.mrb[0].mxu0
    %v1270 = vpop.f32.mrb[0].mxu0
    %v1271 = vadd.f32 %v970, %v1270
    %v1272 = vpop.f32.mrb[0].mxu0
    %1273 = vmatprep.mubr.bf16.mxu0 0
    %1274 = vmatmul.mubr.bf16.gmra.mrb[0].mxu0 %v1039
    %v1275 = vpop.f32.mrb[0].mxu0
    %v1276 = vadd.f32 %v970, %v1275
    %v1277 = vpop.f32.mrb[0].mxu0
    %v1278 = vpop.f32.mrb[0].mxu0
    %v1279 = vadd.f32 %v970, %v1278
    %v1280 = vpop.f32.mrb[0].mxu0
    %1281 = vmatprep.mubr.bf16.mxu0 0
    %1282 = vmatmul.mubr.bf16.gmra.mrb[0].mxu0 %v1042
    %v1283 = vpop.f32.mrb[0].mxu0
    %v1284 = vadd.f32 %v970, %v1283
    %v1285 = vpop.f32.mrb[0].mxu0
    %v1286 = vpop.f32.mrb[0].mxu0
    %v1287 = vadd.f32 %v970, %v1286
    %v1288 = vpop.f32.mrb[0].mxu0
    %1289 = vmatprep.mubr.bf16.mxu0 0
    %1290 = vmatmul.mubr.bf16.gmra.mrb[0].mxu0 %v1045
    %v1291 = vpop.f32.mrb[0].mxu0
    %v1292 = vadd.f32 %v970, %v1291
    %v1293 = vpop.f32.mrb[0].mxu0
    %v1294 = vpop.f32.mrb[0].mxu0
    %v1295 = vadd.f32 %v970, %v1294
    %v1296 = vpop.f32.mrb[0].mxu0
    %1297 = vmatprep.mubr.bf16.mxu0 0
    %1298 = vmatmul.mubr.bf16.gmra.mrb[0].mxu0 %v1048
    %v1299 = vpop.f32.mrb[0].mxu0
    %v1300 = vadd.f32 %v970, %v1299
    %v1301 = vpop.f32.mrb[0].mxu0
    %v1302 = vpop.f32.mrb[0].mxu0
    %v1303 = vadd.f32 %v970, %v1302
    %v1304 = vpop.f32.mrb[0].mxu0
    %1305 = vmatprep.mubr.bf16.mxu0 0
    %1306 = vmatmul.mubr.bf16.gmra.mrb[0].mxu0 %v1051
    %v1307 = vpop.f32.mrb[0].mxu0
    %v1308 = vadd.f32 %v970, %v1307
    %v1309 = vpop.f32.mrb[0].mxu0
    %v1310 = vpop.f32.mrb[0].mxu0
    %v1311 = vadd.f32 %v970, %v1310
    %v1312 = vpop.f32.mrb[0].mxu0
    %1313 = vmatprep.mubr.bf16.mxu0 0
    %1314 = vmatmul.mubr.bf16.gmra.mrb[0].mxu0 %v1054
    %v1315 = vpop.f32.mrb[0].mxu0
    %v1316 = vadd.f32 %v970, %v1315
    %v1317 = vpop.f32.mrb[0].mxu0
    %v1318 = vpop.f32.mrb[0].mxu0
    %v1319 = vadd.f32 %v970, %v1318
    %v1320 = vpop.f32.mrb[0].mxu0
    %1321 = vmatprep.mubr.bf16.mxu0 0
    %1322 = vmatmul.mubr.bf16.gmra.mrb[0].mxu0 %v1057
    %v1323 = vpop.f32.mrb[0].mxu0
    %v1324 = vadd.f32 %v970, %v1323
    %v1325 = vpop.f32.mrb[0].mxu0
    %v1326 = vpop.f32.mrb[0].mxu0
    %v1327 = vadd.f32 %v970, %v1326
    %v1328 = vpop.f32.mrb[0].mxu0
    %1329 = vmatprep.mubr.bf16.mxu0 0
    %1330 = vmatmul.mubr.bf16.gmra.mrb[0].mxu0 %v1060
    %v1331 = vpop.f32.mrb[0].mxu0
    %v1332 = vadd.f32 %v970, %v1331
    %v1333 = vpop.f32.mrb[0].mxu0
    %v1334 = vpop.f32.mrb[0].mxu0
    %v1335 = vadd.f32 %v970, %v1334
    %v1336 = vpop.f32.mrb[0].mxu0
    %1337 = vmatprep.mubr.bf16.mxu0 0
    %1338 = vmatmul.mubr.bf16.gmra.mrb[0].mxu0 %v1063
    %v1339 = vpop.f32.mrb[0].mxu0
    %v1340 = vadd.f32 %v970, %v1339
    %v1341 = vpop.f32.mrb[0].mxu0
    %v1342 = vpop.f32.mrb[0].mxu0
    %v1343 = vadd.f32 %v970, %v1342
    %v1344 = vpop.f32.mrb[0].mxu0
    %1345 = vmatprep.mubr.bf16.mxu0 0
    %1346 = vmatmul.mubr.bf16.gmra.mrb[0].mxu0 %v1066
    %v1347 = vpop.f32.mrb[0].mxu0
    %v1348 = vadd.f32 %v970, %v1347
    %v1349 = vpop.f32.mrb[0].mxu0
    %v1350 = vpop.f32.mrb[0].mxu0
    %v1351 = vadd.f32 %v970, %v1350
    %v1352 = vpop.f32.mrb[0].mxu0
    %1353 = vmatprep.mubr.bf16.mxu0 0
    %1354 = vmatmul.mubr.bf16.gmra.mrb[0].mxu0 %v1069
    %v1355 = vpop.f32.mrb[0].mxu0
    %v1356 = vadd.f32 %v970, %v1355
    %v1357 = vpop.f32.mrb[0].mxu0
    %v1358 = vpop.f32.mrb[0].mxu0
    %v1359 = vadd.f32 %v970, %v1358
    %v1360 = vpop.f32.mrb[0].mxu0
    %1361 = vmatprep.mubr.bf16.mxu0 0
    %1362 = vmatmul.mubr.bf16.gmra.mrb[0].mxu0 %v1072
    %v1363 = vpop.f32.mrb[0].mxu0
    %v1364 = vadd.f32 %v970, %v1363
    %v1365 = vpop.f32.mrb[0].mxu0
    %v1366 = vpop.f32.mrb[0].mxu0
    %v1367 = vadd.f32 %v970, %v1366
    %v1368 = vpop.f32.mrb[0].mxu0
    %1369 = vdwg.mxu0
    %v1370 = vmax.f32 %v1116, 0.0
    %v1371 = vmax.f32 %v1119, 0.0
    %v1372 = vmax.f32 %v1124, 0.0
    %v1373 = vmax.f32 %v1127, 0.0
    %v1374 = vmax.f32 %v1132, 0.0
    %v1375 = vmax.f32 %v1135, 0.0
    %v1376 = vmax.f32 %v1140, 0.0
    %v1377 = vmax.f32 %v1143, 0.0
    %v1378 = vmax.f32 %v1148, 0.0
    %v1379 = vmax.f32 %v1151, 0.0
    %v1380 = vmax.f32 %v1156, 0.0
    %v1381 = vmax.f32 %v1159, 0.0
    %v1382 = vmax.f32 %v1164, 0.0
    %v1383 = vmax.f32 %v1167, 0.0
    %v1384 = vmax.f32 %v1172, 0.0
    %v1385 = vmax.f32 %v1175, 0.0
    %v1386 = vmax.f32 %v1180, 0.0
    %v1387 = vmax.f32 %v1183, 0.0
    %v1388 = vmax.f32 %v1188, 0.0
    %v1389 = vmax.f32 %v1191, 0.0
    %v1390 = vmax.f32 %v1196, 0.0
    %v1391 = vmax.f32 %v1199, 0.0
    %v1392 = vmax.f32 %v1204, 0.0
    %v1393 = vmax.f32 %v1207, 0.0
    %v1394 = vmax.f32 %v1212, 0.0
    %v1395 = vmax.f32 %v1215, 0.0
    %v1396 = vmax.f32 %v1220, 0.0
    %v1397 = vmax.f32 %v1223, 0.0
    %v1398 = vmax.f32 %v1228, 0.0
    %v1399 = vmax.f32 %v1231, 0.0
    %v1400 = vmax.f32 %v1236, 0.0
    %v1401 = vmax.f32 %v1239, 0.0
    %v1402 = vmax.f32 %v1244, 0.0
    %v1403 = vmax.f32 %v1247, 0.0
    %v1404 = vmax.f32 %v1252, 0.0
    %v1405 = vmax.f32 %v1255, 0.0
    %v1406 = vmax.f32 %v1260, 0.0
    %v1407 = vmax.f32 %v1263, 0.0
    %v1408 = vmax.f32 %v1268, 0.0
    %v1409 = vmax.f32 %v1271, 0.0
    %v1410 = vmax.f32 %v1276, 0.0
    %v1411 = vmax.f32 %v1279, 0.0
    %v1412 = vmax.f32 %v1284, 0.0
    %v1413 = vmax.f32 %v1287, 0.0
    %v1414 = vmax.f32 %v1292, 0.0
    %v1415 = vmax.f32 %v1295, 0.0
    %v1416 = vmax.f32 %v1300, 0.0
    %v1417 = vmax.f32 %v1303, 0.0
    %v1418 = vmax.f32 %v1308, 0.0
    %v1419 = vmax.f32 %v1311, 0.0
    %v1420 = vmax.f32 %v1316, 0.0
    %v1421 = vmax.f32 %v1319, 0.0
    %v1422 = vmax.f32 %v1324, 0.0
    %v1423 = vmax.f32 %v1327, 0.0
    %v1424 = vmax.f32 %v1332, 0.0
    %v1425 = vmax.f32 %v1335, 0.0
    %v1426 = vmax.f32 %v1340, 0.0
    %v1427 = vmax.f32 %v1343, 0.0
    %v1428 = vmax.f32 %v1348, 0.0
    %v1429 = vmax.f32 %v1351, 0.0
    %v1430 = vmax.f32 %v1356, 0.0
    %v1431 = vmax.f32 %v1359, 0.0
    %v1432 = vmax.f32 %v1364, 0.0
    %v1433 = vmax.f32 %v1367, 0.0
    %v1434 = vpack.c.bf16 %v1371, %v1370
    %v1435 = vpack.c.bf16 %v1373, %v1372
    %v1436 = vpack.c.bf16 %v1375, %v1374
    %v1437 = vpack.c.bf16 %v1377, %v1376
    %v1438 = vpack.c.bf16 %v1379, %v1378
    %v1439 = vpack.c.bf16 %v1381, %v1380
    %v1440 = vpack.c.bf16 %v1383, %v1382
    %v1441 = vpack.c.bf16 %v1385, %v1384
    %v1442 = vpack.c.bf16 %v1387, %v1386
    %v1443 = vpack.c.bf16 %v1389, %v1388
    %v1444 = vpack.c.bf16 %v1391, %v1390
    %v1445 = vpack.c.bf16 %v1393, %v1392
    %v1446 = vpack.c.bf16 %v1395, %v1394
    %v1447 = vpack.c.bf16 %v1397, %v1396
    %v1448 = vpack.c.bf16 %v1399, %v1398
    %v1449 = vpack.c.bf16 %v1401, %v1400
    %v1450 = vpack.c.bf16 %v1403, %v1402
    %v1451 = vpack.c.bf16 %v1405, %v1404
    %v1452 = vpack.c.bf16 %v1407, %v1406
    %v1453 = vpack.c.bf16 %v1409, %v1408
    %v1454 = vpack.c.bf16 %v1411, %v1410
    %v1455 = vpack.c.bf16 %v1413, %v1412
    %v1456 = vpack.c.bf16 %v1415, %v1414
    %v1457 = vpack.c.bf16 %v1417, %v1416
    %v1458 = vpack.c.bf16 %v1419, %v1418
    %v1459 = vpack.c.bf16 %v1421, %v1420
    %v1460 = vpack.c.bf16 %v1423, %v1422
    %v1461 = vpack.c.bf16 %v1425, %v1424
    %v1462 = vpack.c.bf16 %v1427, %v1426
    %v1463 = vpack.c.bf16 %v1429, %v1428
    %v1464 = vpack.c.bf16 %v1431, %v1430
    %v1465 = vpack.c.bf16 %v1433, %v1432
    %v1466 = vld [vmem:[%s4] sm:$0xf]
    %v1467 = vld [vmem:[%s4 + $0x4] sm:$0xf]
    %v1470 = vunpack.c.l.b16 %v1466
    %v1471 = vunpack.c.l.b16 %v1467
    %v1472 = vpack.c.b16 %v1471, %v1470
    %vm1474 = vcmask 130048
    %v1476 = vsel %vm1474, %v1434, 0
    %v1479 = vsel %vm1474, %v1435, 0
    %v1482 = vsel %vm1474, %v1436, 0
    %v1485 = vsel %vm1474, %v1437, 0
    %v1488 = vsel %vm1474, %v1438, 0
    %v1491 = vsel %vm1474, %v1439, 0
    %v1494 = vsel %vm1474, %v1440, 0
    %v1497 = vsel %vm1474, %v1441, 0
    %v1500 = vsel %vm1474, %v1442, 0
    %v1503 = vsel %vm1474, %v1443, 0
    %v1506 = vsel %vm1474, %v1444, 0
    %v1509 = vsel %vm1474, %v1445, 0
    %v1512 = vsel %vm1474, %v1446, 0
    %v1515 = vsel %vm1474, %v1447, 0
    %v1518 = vsel %vm1474, %v1448, 0
    %v1521 = vsel %vm1474, %v1449, 0
    %v1524 = vsel %vm1474, %v1450, 0
    %v1527 = vsel %vm1474, %v1451, 0
    %v1530 = vsel %vm1474, %v1452, 0
    %v1533 = vsel %vm1474, %v1453, 0
    %v1536 = vsel %vm1474, %v1454, 0
    %v1539 = vsel %vm1474, %v1455, 0
    %v1542 = vsel %vm1474, %v1456, 0
    %v1545 = vsel %vm1474, %v1457, 0
    %v1548 = vsel %vm1474, %v1458, 0
    %v1551 = vsel %vm1474, %v1459, 0
    %v1554 = vsel %vm1474, %v1460, 0
    %v1557 = vsel %vm1474, %v1461, 0
    %v1560 = vsel %vm1474, %v1462, 0
    %v1563 = vsel %vm1474, %v1463, 0
    %v1566 = vsel %vm1474, %v1464, 0
    %v1569 = vsel %vm1474, %v1465, 0
    %1571 = vmatprep.subr.bf16.mxu0 0
    %1572 = vmatpush1.bf16.msra.mxu0 %v1472
    %1573 = vmatprep.subr.bf16.mxu0 0
    %1574 = vmatpush1.bf16.msra.mxu0 0
    %1575 = vmatprep.subr.bf16.mxu0 0
    %1576 = vmatpush1.bf16.msra.mxu0 0
    %1577 = vmatprep.subr.bf16.mxu0 0
    %1578 = vmatpush1.bf16.msra.mxu0 0
    %1579 = vmatprep.subr.bf16.mxu0 0
    %1580 = vmatpush1.bf16.msra.mxu0 0
    %1581 = vmatprep.subr.bf16.mxu0 0
    %1582 = vmatpush1.bf16.msra.mxu0 0
    %1583 = vmatprep.subr.bf16.mxu0 0
    %1584 = vmatpush1.bf16.msra.mxu0 0
    %1585 = vmatprep.subr.bf16.mxu0 0
    %1586 = vmatpush1.bf16.msra.mxu0 0
    %1587 = vmatprep.subr.bf16.mxu0 0
    %1588 = vmatpush1.bf16.msra.mxu0 0
    %1589 = vmatprep.subr.bf16.mxu0 0
    %1590 = vmatpush1.bf16.msra.mxu0 0
    %1591 = vmatprep.subr.bf16.mxu0 0
    %1592 = vmatpush1.bf16.msra.mxu0 0
    %1593 = vmatprep.subr.bf16.mxu0 0
    %1594 = vmatpush1.bf16.msra.mxu0 0
    %1595 = vmatprep.subr.bf16.mxu0 0
    %1596 = vmatpush1.bf16.msra.mxu0 0
    %1597 = vmatprep.subr.bf16.mxu0 0
    %1598 = vmatpush1.bf16.msra.mxu0 0
    %1599 = vmatprep.subr.bf16.mxu0 0
    %1600 = vmatpush1.bf16.msra.mxu0 0
    %1601 = vmatprep.subr.bf16.mxu0 0
    %1602 = vmatpush1.bf16.msra.mxu0 0
    %1603 = vmatprep.mubr.bf16.mxu0 0
    %1604 = vmatmul.mubr.bf16.gmra.mrb[0].mxu0 %v1476
    %v1605 = vpop.f32.mrb[0].mxu0
    %v1606 = vadd.f32 0.0, %v1605
    %v1607 = vpop.f32.mrb[0].mxu0
    %v1608 = vpop.f32.mrb[0].mxu0
    %v1609 = vadd.f32 0.0, %v1608
    %v1610 = vpop.f32.mrb[0].mxu0
    %1611 = vmatprep.mubr.bf16.mxu0 0
    %1612 = vmatmul.mubr.bf16.gmra.mrb[0].mxu0 %v1479
    %v1613 = vpop.f32.mrb[0].mxu0
    %v1614 = vadd.f32 0.0, %v1613
    %v1615 = vpop.f32.mrb[0].mxu0
    %v1616 = vpop.f32.mrb[0].mxu0
    %v1617 = vadd.f32 0.0, %v1616
    %v1618 = vpop.f32.mrb[0].mxu0
    %1619 = vmatprep.mubr.bf16.mxu0 0
    %1620 = vmatmul.mubr.bf16.gmra.mrb[0].mxu0 %v1482
    %v1621 = vpop.f32.mrb[0].mxu0
    %v1622 = vadd.f32 0.0, %v1621
    %v1623 = vpop.f32.mrb[0].mxu0
    %v1624 = vpop.f32.mrb[0].mxu0
    %v1625 = vadd.f32 0.0, %v1624
    %v1626 = vpop.f32.mrb[0].mxu0
    %1627 = vmatprep.mubr.bf16.mxu0 0
    %1628 = vmatmul.mubr.bf16.gmra.mrb[0].mxu0 %v1485
    %v1629 = vpop.f32.mrb[0].mxu0
    %v1630 = vadd.f32 0.0, %v1629
    %v1631 = vpop.f32.mrb[0].mxu0
    %v1632 = vpop.f32.mrb[0].mxu0
    %v1633 = vadd.f32 0.0, %v1632
    %v1634 = vpop.f32.mrb[0].mxu0
    %1635 = vmatprep.mubr.bf16.mxu0 0
    %1636 = vmatmul.mubr.bf16.gmra.mrb[0].mxu0 %v1488
    %v1637 = vpop.f32.mrb[0].mxu0
    %v1638 = vadd.f32 0.0, %v1637
    %v1639 = vpop.f32.mrb[0].mxu0
    %v1640 = vpop.f32.mrb[0].mxu0
    %v1641 = vadd.f32 0.0, %v1640
    %v1642 = vpop.f32.mrb[0].mxu0
    %1643 = vmatprep.mubr.bf16.mxu0 0
    %1644 = vmatmul.mubr.bf16.gmra.mrb[0].mxu0 %v1491
    %v1645 = vpop.f32.mrb[0].mxu0
    %v1646 = vadd.f32 0.0, %v1645
    %v1647 = vpop.f32.mrb[0].mxu0
    %v1648 = vpop.f32.mrb[0].mxu0
    %v1649 = vadd.f32 0.0, %v1648
    %v1650 = vpop.f32.mrb[0].mxu0
    %1651 = vmatprep.mubr.bf16.mxu0 0
    %1652 = vmatmul.mubr.bf16.gmra.mrb[0].mxu0 %v1494
    %v1653 = vpop.f32.mrb[0].mxu0
    %v1654 = vadd.f32 0.0, %v1653
    %v1655 = vpop.f32.mrb[0].mxu0
    %v1656 = vpop.f32.mrb[0].mxu0
    %v1657 = vadd.f32 0.0, %v1656
    %v1658 = vpop.f32.mrb[0].mxu0
    %1659 = vmatprep.mubr.bf16.mxu0 0
    %1660 = vmatmul.mubr.bf16.gmra.mrb[0].mxu0 %v1497
    %v1661 = vpop.f32.mrb[0].mxu0
    %v1662 = vadd.f32 0.0, %v1661
    %v1663 = vpop.f32.mrb[0].mxu0
    %v1664 = vpop.f32.mrb[0].mxu0
    %v1665 = vadd.f32 0.0, %v1664
    %v1666 = vpop.f32.mrb[0].mxu0
    %1667 = vmatprep.mubr.bf16.mxu0 0
    %1668 = vmatmul.mubr.bf16.gmra.mrb[0].mxu0 %v1500
    %v1669 = vpop.f32.mrb[0].mxu0
    %v1670 = vadd.f32 0.0, %v1669
    %v1671 = vpop.f32.mrb[0].mxu0
    %v1672 = vpop.f32.mrb[0].mxu0
    %v1673 = vadd.f32 0.0, %v1672
    %v1674 = vpop.f32.mrb[0].mxu0
    %1675 = vmatprep.mubr.bf16.mxu0 0
    %1676 = vmatmul.mubr.bf16.gmra.mrb[0].mxu0 %v1503
    %v1677 = vpop.f32.mrb[0].mxu0
    %v1678 = vadd.f32 0.0, %v1677
    %v1679 = vpop.f32.mrb[0].mxu0
    %v1680 = vpop.f32.mrb[0].mxu0
    %v1681 = vadd.f32 0.0, %v1680
    %v1682 = vpop.f32.mrb[0].mxu0
    %1683 = vmatprep.mubr.bf16.mxu0 0
    %1684 = vmatmul.mubr.bf16.gmra.mrb[0].mxu0 %v1506
    %v1685 = vpop.f32.mrb[0].mxu0
    %v1686 = vadd.f32 0.0, %v1685
    %v1687 = vpop.f32.mrb[0].mxu0
    %v1688 = vpop.f32.mrb[0].mxu0
    %v1689 = vadd.f32 0.0, %v1688
    %v1690 = vpop.f32.mrb[0].mxu0
    %1691 = vmatprep.mubr.bf16.mxu0 0
    %1692 = vmatmul.mubr.bf16.gmra.mrb[0].mxu0 %v1509
    %v1693 = vpop.f32.mrb[0].mxu0
    %v1694 = vadd.f32 0.0, %v1693
    %v1695 = vpop.f32.mrb[0].mxu0
    %v1696 = vpop.f32.mrb[0].mxu0
    %v1697 = vadd.f32 0.0, %v1696
    %v1698 = vpop.f32.mrb[0].mxu0
    %1699 = vmatprep.mubr.bf16.mxu0 0
    %1700 = vmatmul.mubr.bf16.gmra.mrb[0].mxu0 %v1512
    %v1701 = vpop.f32.mrb[0].mxu0
    %v1702 = vadd.f32 0.0, %v1701
    %v1703 = vpop.f32.mrb[0].mxu0
    %v1704 = vpop.f32.mrb[0].mxu0
    %v1705 = vadd.f32 0.0, %v1704
    %v1706 = vpop.f32.mrb[0].mxu0
    %1707 = vmatprep.mubr.bf16.mxu0 0
    %1708 = vmatmul.mubr.bf16.gmra.mrb[0].mxu0 %v1515
    %v1709 = vpop.f32.mrb[0].mxu0
    %v1710 = vadd.f32 0.0, %v1709
    %v1711 = vpop.f32.mrb[0].mxu0
    %v1712 = vpop.f32.mrb[0].mxu0
    %v1713 = vadd.f32 0.0, %v1712
    %v1714 = vpop.f32.mrb[0].mxu0
    %1715 = vmatprep.mubr.bf16.mxu0 0
    %1716 = vmatmul.mubr.bf16.gmra.mrb[0].mxu0 %v1518
    %v1717 = vpop.f32.mrb[0].mxu0
    %v1718 = vadd.f32 0.0, %v1717
    %v1719 = vpop.f32.mrb[0].mxu0
    %v1720 = vpop.f32.mrb[0].mxu0
    %v1721 = vadd.f32 0.0, %v1720
    %v1722 = vpop.f32.mrb[0].mxu0
    %1723 = vmatprep.mubr.bf16.mxu0 0
    %1724 = vmatmul.mubr.bf16.gmra.mrb[0].mxu0 %v1521
    %v1725 = vpop.f32.mrb[0].mxu0
    %v1726 = vadd.f32 0.0, %v1725
    %v1727 = vpop.f32.mrb[0].mxu0
    %v1728 = vpop.f32.mrb[0].mxu0
    %v1729 = vadd.f32 0.0, %v1728
    %v1730 = vpop.f32.mrb[0].mxu0
    %1731 = vmatprep.mubr.bf16.mxu0 0
    %1732 = vmatmul.mubr.bf16.gmra.mrb[0].mxu0 %v1524
    %v1733 = vpop.f32.mrb[0].mxu0
    %v1734 = vadd.f32 0.0, %v1733
    %v1735 = vpop.f32.mrb[0].mxu0
    %v1736 = vpop.f32.mrb[0].mxu0
    %v1737 = vadd.f32 0.0, %v1736
    %v1738 = vpop.f32.mrb[0].mxu0
    %1739 = vmatprep.mubr.bf16.mxu0 0
    %1740 = vmatmul.mubr.bf16.gmra.mrb[0].mxu0 %v1527
    %v1741 = vpop.f32.mrb[0].mxu0
    %v1742 = vadd.f32 0.0, %v1741
    %v1743 = vpop.f32.mrb[0].mxu0
    %v1744 = vpop.f32.mrb[0].mxu0
    %v1745 = vadd.f32 0.0, %v1744
    %v1746 = vpop.f32.mrb[0].mxu0
    %1747 = vmatprep.mubr.bf16.mxu0 0
    %1748 = vmatmul.mubr.bf16.gmra.mrb[0].mxu0 %v1530
    %v1749 = vpop.f32.mrb[0].mxu0
    %v1750 = vadd.f32 0.0, %v1749
    %v1751 = vpop.f32.mrb[0].mxu0
    %v1752 = vpop.f32.mrb[0].mxu0
    %v1753 = vadd.f32 0.0, %v1752
    %v1754 = vpop.f32.mrb[0].mxu0
    %1755 = vmatprep.mubr.bf16.mxu0 0
    %1756 = vmatmul.mubr.bf16.gmra.mrb[0].mxu0 %v1533
    %v1757 = vpop.f32.mrb[0].mxu0
    %v1758 = vadd.f32 0.0, %v1757
    %v1759 = vpop.f32.mrb[0].mxu0
    %v1760 = vpop.f32.mrb[0].mxu0
    %v1761 = vadd.f32 0.0, %v1760
    %v1762 = vpop.f32.mrb[0].mxu0
    %1763 = vmatprep.mubr.bf16.mxu0 0
    %1764 = vmatmul.mubr.bf16.gmra.mrb[0].mxu0 %v1536
    %v1765 = vpop.f32.mrb[0].mxu0
    %v1766 = vadd.f32 0.0, %v1765
    %v1767 = vpop.f32.mrb[0].mxu0
    %v1768 = vpop.f32.mrb[0].mxu0
    %v1769 = vadd.f32 0.0, %v1768
    %v1770 = vpop.f32.mrb[0].mxu0
    %1771 = vmatprep.mubr.bf16.mxu0 0
    %1772 = vmatmul.mubr.bf16.gmra.mrb[0].mxu0 %v1539
    %v1773 = vpop.f32.mrb[0].mxu0
    %v1774 = vadd.f32 0.0, %v1773
    %v1775 = vpop.f32.mrb[0].mxu0
    %v1776 = vpop.f32.mrb[0].mxu0
    %v1777 = vadd.f32 0.0, %v1776
    %v1778 = vpop.f32.mrb[0].mxu0
    %1779 = vmatprep.mubr.bf16.mxu0 0
    %1780 = vmatmul.mubr.bf16.gmra.mrb[0].mxu0 %v1542
    %v1781 = vpop.f32.mrb[0].mxu0
    %v1782 = vadd.f32 0.0, %v1781
    %v1783 = vpop.f32.mrb[0].mxu0
    %v1784 = vpop.f32.mrb[0].mxu0
    %v1785 = vadd.f32 0.0, %v1784
    %v1786 = vpop.f32.mrb[0].mxu0
    %1787 = vmatprep.mubr.bf16.mxu0 0
    %1788 = vmatmul.mubr.bf16.gmra.mrb[0].mxu0 %v1545
    %v1789 = vpop.f32.mrb[0].mxu0
    %v1790 = vadd.f32 0.0, %v1789
    %v1791 = vpop.f32.mrb[0].mxu0
    %v1792 = vpop.f32.mrb[0].mxu0
    %v1793 = vadd.f32 0.0, %v1792
    %v1794 = vpop.f32.mrb[0].mxu0
    %1795 = vmatprep.mubr.bf16.mxu0 0
    %1796 = vmatmul.mubr.bf16.gmra.mrb[0].mxu0 %v1548
    %v1797 = vpop.f32.mrb[0].mxu0
    %v1798 = vadd.f32 0.0, %v1797
    %v1799 = vpop.f32.mrb[0].mxu0
    %v1800 = vpop.f32.mrb[0].mxu0
    %v1801 = vadd.f32 0.0, %v1800
    %v1802 = vpop.f32.mrb[0].mxu0
    %1803 = vmatprep.mubr.bf16.mxu0 0
    %1804 = vmatmul.mubr.bf16.gmra.mrb[0].mxu0 %v1551
    %v1805 = vpop.f32.mrb[0].mxu0
    %v1806 = vadd.f32 0.0, %v1805
    %v1807 = vpop.f32.mrb[0].mxu0
    %v1808 = vpop.f32.mrb[0].mxu0
    %v1809 = vadd.f32 0.0, %v1808
    %v1810 = vpop.f32.mrb[0].mxu0
    %1811 = vmatprep.mubr.bf16.mxu0 0
    %1812 = vmatmul.mubr.bf16.gmra.mrb[0].mxu0 %v1554
    %v1813 = vpop.f32.mrb[0].mxu0
    %v1814 = vadd.f32 0.0, %v1813
    %v1815 = vpop.f32.mrb[0].mxu0
    %v1816 = vpop.f32.mrb[0].mxu0
    %v1817 = vadd.f32 0.0, %v1816
    %v1818 = vpop.f32.mrb[0].mxu0
    %1819 = vmatprep.mubr.bf16.mxu0 0
    %1820 = vmatmul.mubr.bf16.gmra.mrb[0].mxu0 %v1557
    %v1821 = vpop.f32.mrb[0].mxu0
    %v1822 = vadd.f32 0.0, %v1821
    %v1823 = vpop.f32.mrb[0].mxu0
    %v1824 = vpop.f32.mrb[0].mxu0
    %v1825 = vadd.f32 0.0, %v1824
    %v1826 = vpop.f32.mrb[0].mxu0
    %1827 = vmatprep.mubr.bf16.mxu0 0
    %1828 = vmatmul.mubr.bf16.gmra.mrb[0].mxu0 %v1560
    %v1829 = vpop.f32.mrb[0].mxu0
    %v1830 = vadd.f32 0.0, %v1829
    %v1831 = vpop.f32.mrb[0].mxu0
    %v1832 = vpop.f32.mrb[0].mxu0
    %v1833 = vadd.f32 0.0, %v1832
    %v1834 = vpop.f32.mrb[0].mxu0
    %1835 = vmatprep.mubr.bf16.mxu0 0
    %1836 = vmatmul.mubr.bf16.gmra.mrb[0].mxu0 %v1563
    %v1837 = vpop.f32.mrb[0].mxu0
    %v1838 = vadd.f32 0.0, %v1837
    %v1839 = vpop.f32.mrb[0].mxu0
    %v1840 = vpop.f32.mrb[0].mxu0
    %v1841 = vadd.f32 0.0, %v1840
    %v1842 = vpop.f32.mrb[0].mxu0
    %1843 = vmatprep.mubr.bf16.mxu0 0
    %1844 = vmatmul.mubr.bf16.gmra.mrb[0].mxu0 %v1566
    %v1845 = vpop.f32.mrb[0].mxu0
    %v1846 = vadd.f32 0.0, %v1845
    %v1847 = vpop.f32.mrb[0].mxu0
    %v1848 = vpop.f32.mrb[0].mxu0
    %v1849 = vadd.f32 0.0, %v1848
    %v1850 = vpop.f32.mrb[0].mxu0
    %1851 = vmatprep.mubr.bf16.mxu0 0
    %1852 = vmatmul.mubr.bf16.gmra.mrb[0].mxu0 %v1569
    %v1853 = vpop.f32.mrb[0].mxu0
    %v1854 = vadd.f32 0.0, %v1853
    %v1855 = vpop.f32.mrb[0].mxu0
    %v1856 = vpop.f32.mrb[0].mxu0
    %v1857 = vadd.f32 0.0, %v1856
    %v1858 = vpop.f32.mrb[0].mxu0
    %1859 = vdwg.mxu0
    %v1860 = vpack.c.bf16 %v1609, %v1606
    %v1861 = vpack.c.bf16 %v1617, %v1614
    %v1862 = vpack.c.bf16 %v1625, %v1622
    %v1863 = vpack.c.bf16 %v1633, %v1630
    %v1864 = vpack.c.bf16 %v1641, %v1638
    %v1865 = vpack.c.bf16 %v1649, %v1646
    %v1866 = vpack.c.bf16 %v1657, %v1654
    %v1867 = vpack.c.bf16 %v1665, %v1662
    %v1868 = vpack.c.bf16 %v1673, %v1670
    %v1869 = vpack.c.bf16 %v1681, %v1678
    %v1870 = vpack.c.bf16 %v1689, %v1686
    %v1871 = vpack.c.bf16 %v1697, %v1694
    %v1872 = vpack.c.bf16 %v1705, %v1702
    %v1873 = vpack.c.bf16 %v1713, %v1710
    %v1874 = vpack.c.bf16 %v1721, %v1718
    %v1875 = vpack.c.bf16 %v1729, %v1726
    %v1876 = vpack.c.bf16 %v1737, %v1734
    %v1877 = vpack.c.bf16 %v1745, %v1742
    %v1878 = vpack.c.bf16 %v1753, %v1750
    %v1879 = vpack.c.bf16 %v1761, %v1758
    %v1880 = vpack.c.bf16 %v1769, %v1766
    %v1881 = vpack.c.bf16 %v1777, %v1774
    %v1882 = vpack.c.bf16 %v1785, %v1782
    %v1883 = vpack.c.bf16 %v1793, %v1790
    %v1884 = vpack.c.bf16 %v1801, %v1798
    %v1885 = vpack.c.bf16 %v1809, %v1806
    %v1886 = vpack.c.bf16 %v1817, %v1814
    %v1887 = vpack.c.bf16 %v1825, %v1822
    %v1888 = vpack.c.bf16 %v1833, %v1830
    %v1889 = vpack.c.bf16 %v1841, %v1838
    %v1890 = vpack.c.bf16 %v1849, %v1846
    %v1891 = vpack.c.bf16 %v1857, %v1854
    %1892 = vmatprep.subr.bf16.mxu0 0
    %1893 = vmatpush1.bf16.msra.mxu0 %v1860
    %1894 = vmatprep.subr.bf16.mxu0 0
    %1895 = vmatpush1.bf16.msra.mxu0 %v1861
    %1896 = vmatprep.subr.bf16.mxu0 0
    %1897 = vmatpush1.bf16.msra.mxu0 %v1862
    %1898 = vmatprep.subr.bf16.mxu0 0
    %1899 = vmatpush1.bf16.msra.mxu0 %v1863
    %1900 = vmatprep.subr.bf16.mxu0 0
    %1901 = vmatpush1.bf16.msra.mxu0 %v1864
    %1902 = vmatprep.subr.bf16.mxu0 0
    %1903 = vmatpush1.bf16.msra.mxu0 %v1865
    %1904 = vmatprep.subr.bf16.mxu0 0
    %1905 = vmatpush1.bf16.msra.mxu0 %v1866
    %1906 = vmatprep.subr.bf16.mxu0 0
    %1907 = vmatpush1.bf16.msra.mxu0 %v1867
    %1908 = vmatprep.subr.bf16.mxu0 0
    %1909 = vmatpush1.bf16.msra.mxu0 0
    %1910 = vmatprep.subr.bf16.mxu0 0
    %1911 = vmatpush1.bf16.msra.mxu0 0
    %1912 = vmatprep.subr.bf16.mxu0 0
    %1913 = vmatpush1.bf16.msra.mxu0 0
    %1914 = vmatprep.subr.bf16.mxu0 0
    %1915 = vmatpush1.bf16.msra.mxu0 0
    %1916 = vmatprep.subr.bf16.mxu0 0
    %1917 = vmatpush1.bf16.msra.mxu0 0
    %1918 = vmatprep.subr.bf16.mxu0 0
    %1919 = vmatpush1.bf16.msra.mxu0 0
    %1920 = vmatprep.subr.bf16.mxu0 0
    %1921 = vmatpush1.bf16.msra.mxu0 0
    %1922 = vmatprep.subr.bf16.mxu0 0
    %1923 = vmatpush1.bf16.msra.mxu0 0
    %1924 = vmatprep.mubr.bf16.mxu0 0
    %1925 = vmatmul.mubr.bf16.gmra.mrb[0].mxu0 %v89
    %v1926 = vpop.f32.mrb[0].mxu0
    %v1927 = vadd.f32 0.0, %v1926
    %v1928 = vpop.f32.mrb[0].mxu0
    %v1929 = vpop.f32.mrb[0].mxu0
    %v1930 = vadd.f32 0.0, %v1929
    %v1931 = vpop.f32.mrb[0].mxu0
    %1932 = vmatprep.mubr.bf16.mxu0 0
    %1933 = vmatmul.mubr.bf16.gmra.mrb[0].mxu0 %v90
    %v1934 = vpop.f32.mrb[0].mxu0
    %v1935 = vadd.f32 0.0, %v1934
    %v1936 = vpop.f32.mrb[0].mxu0
    %v1937 = vpop.f32.mrb[0].mxu0
    %v1938 = vadd.f32 0.0, %v1937
    %v1939 = vpop.f32.mrb[0].mxu0
    %1940 = vmatprep.mubr.bf16.mxu0 0
    %1941 = vmatmul.mubr.bf16.gmra.mrb[0].mxu0 %v91
    %v1942 = vpop.f32.mrb[0].mxu0
    %v1943 = vadd.f32 0.0, %v1942
    %v1944 = vpop.f32.mrb[0].mxu0
    %v1945 = vpop.f32.mrb[0].mxu0
    %v1946 = vadd.f32 0.0, %v1945
    %v1947 = vpop.f32.mrb[0].mxu0
    %1948 = vmatprep.mubr.bf16.mxu0 0
    %1949 = vmatmul.mubr.bf16.gmra.mrb[0].mxu0 %v92
    %v1950 = vpop.f32.mrb[0].mxu0
    %v1951 = vadd.f32 0.0, %v1950
    %v1952 = vpop.f32.mrb[0].mxu0
    %v1953 = vpop.f32.mrb[0].mxu0
    %v1954 = vadd.f32 0.0, %v1953
    %v1955 = vpop.f32.mrb[0].mxu0
    %1956 = vmatprep.mubr.bf16.mxu0 0
    %1957 = vmatmul.mubr.bf16.gmra.mrb[0].mxu0 %v93
    %v1958 = vpop.f32.mrb[0].mxu0
    %v1959 = vadd.f32 0.0, %v1958
    %v1960 = vpop.f32.mrb[0].mxu0
    %v1961 = vpop.f32.mrb[0].mxu0
    %v1962 = vadd.f32 0.0, %v1961
    %v1963 = vpop.f32.mrb[0].mxu0
    %1964 = vmatprep.mubr.bf16.mxu0 0
    %1965 = vmatmul.mubr.bf16.gmra.mrb[0].mxu0 %v94
    %v1966 = vpop.f32.mrb[0].mxu0
    %v1967 = vadd.f32 0.0, %v1966
    %v1968 = vpop.f32.mrb[0].mxu0
    %v1969 = vpop.f32.mrb[0].mxu0
    %v1970 = vadd.f32 0.0, %v1969
    %v1971 = vpop.f32.mrb[0].mxu0
    %1972 = vmatprep.mubr.bf16.mxu0 0
    %1973 = vmatmul.mubr.bf16.gmra.mrb[0].mxu0 %v95
    %v1974 = vpop.f32.mrb[0].mxu0
    %v1975 = vadd.f32 0.0, %v1974
    %v1976 = vpop.f32.mrb[0].mxu0
    %v1977 = vpop.f32.mrb[0].mxu0
    %v1978 = vadd.f32 0.0, %v1977
    %v1979 = vpop.f32.mrb[0].mxu0
    %1980 = vmatprep.mubr.bf16.mxu0 0
    %1981 = vmatmul.mubr.bf16.gmra.mrb[0].mxu0 %v96
    %v1982 = vpop.f32.mrb[0].mxu0
    %v1983 = vadd.f32 0.0, %v1982
    %v1984 = vpop.f32.mrb[0].mxu0
    %v1985 = vpop.f32.mrb[0].mxu0
    %v1986 = vadd.f32 0.0, %v1985
    %v1987 = vpop.f32.mrb[0].mxu0
    %1988 = vdwg.mxu0
    %v1989 = vmax.f32 %v1927, %v1943
    %v1990 = vmax.f32 %v1930, %v1946
    %v1991 = vmax.f32 %v1935, %v1951
    %v1992 = vmax.f32 %v1938, %v1954
    %v1993 = vmax.f32 %v1989, %v1990
    %v1994 = vmax.f32 %v1991, %v1992
    %v1995 = vmax.f32 %v1993, %v1994
    %v1996 = vrot.slane %v1995, 4
    %v1997 = vmax.f32 %v1995, %v1996
    %v1998 = vrot.slane %v1997, 2
    %v1999 = vmax.f32 %v1997, %v1998
    %v2000 = vrot.slane %v1999, 1
    %v2001 = vmax.f32 %v1999, %v2000
    %v2002 = vmax.f32 %v1959, %v1975
    %v2003 = vmax.f32 %v1962, %v1978
    %v2004 = vmax.f32 %v1967, %v1983
    %v2005 = vmax.f32 %v1970, %v1986
    %v2006 = vmax.f32 %v2002, %v2003
    %v2007 = vmax.f32 %v2004, %v2005
    %v2008 = vmax.f32 %v2006, %v2007
    %v2009 = vrot.slane %v2008, 4
    %v2010 = vmax.f32 %v2008, %v2009
    %v2011 = vrot.slane %v2010, 2
    %v2012 = vmax.f32 %v2010, %v2011
    %v2013 = vrot.slane %v2012, 1
    %v2014 = vmax.f32 %v2012, %v2013
    %2015 = vmatprep.subr.bf16.mxu0 0
    %2016 = vmatpush1.bf16.msra.mxu0 %v1868
    %2017 = vmatprep.subr.bf16.mxu0 0
    %2018 = vmatpush1.bf16.msra.mxu0 %v1869
    %2019 = vmatprep.subr.bf16.mxu0 0
    %2020 = vmatpush1.bf16.msra.mxu0 %v1870
    %2021 = vmatprep.subr.bf16.mxu0 0
    %2022 = vmatpush1.bf16.msra.mxu0 %v1871
    %2023 = vmatprep.subr.bf16.mxu0 0
    %2024 = vmatpush1.bf16.msra.mxu0 %v1872
    %2025 = vmatprep.subr.bf16.mxu0 0
    %2026 = vmatpush1.bf16.msra.mxu0 %v1873
    %2027 = vmatprep.subr.bf16.mxu0 0
    %2028 = vmatpush1.bf16.msra.mxu0 %v1874
    %2029 = vmatprep.subr.bf16.mxu0 0
    %2030 = vmatpush1.bf16.msra.mxu0 %v1875
    %2031 = vmatprep.subr.bf16.mxu0 0
    %2032 = vmatpush1.bf16.msra.mxu0 0
    %2033 = vmatprep.subr.bf16.mxu0 0
    %2034 = vmatpush1.bf16.msra.mxu0 0
    %2035 = vmatprep.subr.bf16.mxu0 0
    %2036 = vmatpush1.bf16.msra.mxu0 0
    %2037 = vmatprep.subr.bf16.mxu0 0
    %2038 = vmatpush1.bf16.msra.mxu0 0
    %2039 = vmatprep.subr.bf16.mxu0 0
    %2040 = vmatpush1.bf16.msra.mxu0 0
    %2041 = vmatprep.subr.bf16.mxu0 0
    %2042 = vmatpush1.bf16.msra.mxu0 0
    %2043 = vmatprep.subr.bf16.mxu0 0
    %2044 = vmatpush1.bf16.msra.mxu0 0
    %2045 = vmatprep.subr.bf16.mxu0 0
    %2046 = vmatpush1.bf16.msra.mxu0 0
    %2047 = vmatprep.mubr.bf16.mxu0 0
    %2048 = vmatmul.mubr.bf16.gmra.mrb[0].mxu0 %v316
    %v2049 = vpop.f32.mrb[0].mxu0
    %v2050 = vadd.f32 0.0, %v2049
    %v2051 = vpop.f32.mrb[0].mxu0
    %v2052 = vpop.f32.mrb[0].mxu0
    %v2053 = vadd.f32 0.0, %v2052
    %v2054 = vpop.f32.mrb[0].mxu0
    %2055 = vmatprep.mubr.bf16.mxu0 0
    %2056 = vmatmul.mubr.bf16.gmra.mrb[0].mxu0 %v317
    %v2057 = vpop.f32.mrb[0].mxu0
    %v2058 = vadd.f32 0.0, %v2057
    %v2059 = vpop.f32.mrb[0].mxu0
    %v2060 = vpop.f32.mrb[0].mxu0
    %v2061 = vadd.f32 0.0, %v2060
    %v2062 = vpop.f32.mrb[0].mxu0
    %2063 = vmatprep.mubr.bf16.mxu0 0
    %2064 = vmatmul.mubr.bf16.gmra.mrb[0].mxu0 %v318
    %v2065 = vpop.f32.mrb[0].mxu0
    %v2066 = vadd.f32 0.0, %v2065
    %v2067 = vpop.f32.mrb[0].mxu0
    %v2068 = vpop.f32.mrb[0].mxu0
    %v2069 = vadd.f32 0.0, %v2068
    %v2070 = vpop.f32.mrb[0].mxu0
    %2071 = vmatprep.mubr.bf16.mxu0 0
    %2072 = vmatmul.mubr.bf16.gmra.mrb[0].mxu0 %v319
    %v2073 = vpop.f32.mrb[0].mxu0
    %v2074 = vadd.f32 0.0, %v2073
    %v2075 = vpop.f32.mrb[0].mxu0
    %v2076 = vpop.f32.mrb[0].mxu0
    %v2077 = vadd.f32 0.0, %v2076
    %v2078 = vpop.f32.mrb[0].mxu0
    %2079 = vmatprep.mubr.bf16.mxu0 0
    %2080 = vmatmul.mubr.bf16.gmra.mrb[0].mxu0 %v320
    %v2081 = vpop.f32.mrb[0].mxu0
    %v2082 = vadd.f32 0.0, %v2081
    %v2083 = vpop.f32.mrb[0].mxu0
    %v2084 = vpop.f32.mrb[0].mxu0
    %v2085 = vadd.f32 0.0, %v2084
    %v2086 = vpop.f32.mrb[0].mxu0
    %2087 = vmatprep.mubr.bf16.mxu0 0
    %2088 = vmatmul.mubr.bf16.gmra.mrb[0].mxu0 %v321
    %v2089 = vpop.f32.mrb[0].mxu0
    %v2090 = vadd.f32 0.0, %v2089
    %v2091 = vpop.f32.mrb[0].mxu0
    %v2092 = vpop.f32.mrb[0].mxu0
    %v2093 = vadd.f32 0.0, %v2092
    %v2094 = vpop.f32.mrb[0].mxu0
    %2095 = vmatprep.mubr.bf16.mxu0 0
    %2096 = vmatmul.mubr.bf16.gmra.mrb[0].mxu0 %v322
    %v2097 = vpop.f32.mrb[0].mxu0
    %v2098 = vadd.f32 0.0, %v2097
    %v2099 = vpop.f32.mrb[0].mxu0
    %v2100 = vpop.f32.mrb[0].mxu0
    %v2101 = vadd.f32 0.0, %v2100
    %v2102 = vpop.f32.mrb[0].mxu0
    %2103 = vmatprep.mubr.bf16.mxu0 0
    %2104 = vmatmul.mubr.bf16.gmra.mrb[0].mxu0 %v323
    %v2105 = vpop.f32.mrb[0].mxu0
    %v2106 = vadd.f32 0.0, %v2105
    %v2107 = vpop.f32.mrb[0].mxu0
    %v2108 = vpop.f32.mrb[0].mxu0
    %v2109 = vadd.f32 0.0, %v2108
    %v2110 = vpop.f32.mrb[0].mxu0
    %2111 = vdwg.mxu0
    %v2112 = vmax.f32 %v2050, %v2066
    %v2113 = vmax.f32 %v2053, %v2069
    %v2114 = vmax.f32 %v2058, %v2074
    %v2115 = vmax.f32 %v2061, %v2077
    %v2116 = vmax.f32 %v2112, %v2113
    %v2117 = vmax.f32 %v2114, %v2115
    %v2118 = vmax.f32 %v2116, %v2117
    %v2119 = vrot.slane %v2118, 4
    %v2120 = vmax.f32 %v2118, %v2119
    %v2121 = vrot.slane %v2120, 2
    %v2122 = vmax.f32 %v2120, %v2121
    %v2123 = vrot.slane %v2122, 1
    %v2124 = vmax.f32 %v2122, %v2123
    %v2125 = vmax.f32 %v2082, %v2098
    %v2126 = vmax.f32 %v2085, %v2101
    %v2127 = vmax.f32 %v2090, %v2106
    %v2128 = vmax.f32 %v2093, %v2109
    %v2129 = vmax.f32 %v2125, %v2126
    %v2130 = vmax.f32 %v2127, %v2128
    %v2131 = vmax.f32 %v2129, %v2130
    %v2132 = vrot.slane %v2131, 4
    %v2133 = vmax.f32 %v2131, %v2132
    %v2134 = vrot.slane %v2133, 2
    %v2135 = vmax.f32 %v2133, %v2134
    %v2136 = vrot.slane %v2135, 1
    %v2137 = vmax.f32 %v2135, %v2136
    %2138 = vmatprep.subr.bf16.mxu0 0
    %2139 = vmatpush1.bf16.msra.mxu0 %v1876
    %2140 = vmatprep.subr.bf16.mxu0 0
    %2141 = vmatpush1.bf16.msra.mxu0 %v1877
    %2142 = vmatprep.subr.bf16.mxu0 0
    %2143 = vmatpush1.bf16.msra.mxu0 %v1878
    %2144 = vmatprep.subr.bf16.mxu0 0
    %2145 = vmatpush1.bf16.msra.mxu0 %v1879
    %2146 = vmatprep.subr.bf16.mxu0 0
    %2147 = vmatpush1.bf16.msra.mxu0 %v1880
    %2148 = vmatprep.subr.bf16.mxu0 0
    %2149 = vmatpush1.bf16.msra.mxu0 %v1881
    %2150 = vmatprep.subr.bf16.mxu0 0
    %2151 = vmatpush1.bf16.msra.mxu0 %v1882
    %2152 = vmatprep.subr.bf16.mxu0 0
    %2153 = vmatpush1.bf16.msra.mxu0 %v1883
    %2154 = vmatprep.subr.bf16.mxu0 0
    %2155 = vmatpush1.bf16.msra.mxu0 0
    %2156 = vmatprep.subr.bf16.mxu0 0
    %2157 = vmatpush1.bf16.msra.mxu0 0
    %2158 = vmatprep.subr.bf16.mxu0 0
    %2159 = vmatpush1.bf16.msra.mxu0 0
    %2160 = vmatprep.subr.bf16.mxu0 0
    %2161 = vmatpush1.bf16.msra.mxu0 0
    %2162 = vmatprep.subr.bf16.mxu0 0
    %2163 = vmatpush1.bf16.msra.mxu0 0
    %2164 = vmatprep.subr.bf16.mxu0 0
    %2165 = vmatpush1.bf16.msra.mxu0 0
    %2166 = vmatprep.subr.bf16.mxu0 0
    %2167 = vmatpush1.bf16.msra.mxu0 0
    %2168 = vmatprep.subr.bf16.mxu0 0
    %2169 = vmatpush1.bf16.msra.mxu0 0
    %2170 = vmatprep.mubr.bf16.mxu0 0
    %2171 = vmatmul.mubr.bf16.gmra.mrb[0].mxu0 %v543
    %v2172 = vpop.f32.mrb[0].mxu0
    %v2173 = vadd.f32 0.0, %v2172
    %v2174 = vpop.f32.mrb[0].mxu0
    %v2175 = vpop.f32.mrb[0].mxu0
    %v2176 = vadd.f32 0.0, %v2175
    %v2177 = vpop.f32.mrb[0].mxu0
    %2178 = vmatprep.mubr.bf16.mxu0 0
    %2179 = vmatmul.mubr.bf16.gmra.mrb[0].mxu0 %v544
    %v2180 = vpop.f32.mrb[0].mxu0
    %v2181 = vadd.f32 0.0, %v2180
    %v2182 = vpop.f32.mrb[0].mxu0
    %v2183 = vpop.f32.mrb[0].mxu0
    %v2184 = vadd.f32 0.0, %v2183
    %v2185 = vpop.f32.mrb[0].mxu0
    %2186 = vmatprep.mubr.bf16.mxu0 0
    %2187 = vmatmul.mubr.bf16.gmra.mrb[0].mxu0 %v545
    %v2188 = vpop.f32.mrb[0].mxu0
    %v2189 = vadd.f32 0.0, %v2188
    %v2190 = vpop.f32.mrb[0].mxu0
    %v2191 = vpop.f32.mrb[0].mxu0
    %v2192 = vadd.f32 0.0, %v2191
    %v2193 = vpop.f32.mrb[0].mxu0
    %2194 = vmatprep.mubr.bf16.mxu0 0
    %2195 = vmatmul.mubr.bf16.gmra.mrb[0].mxu0 %v546
    %v2196 = vpop.f32.mrb[0].mxu0
    %v2197 = vadd.f32 0.0, %v2196
    %v2198 = vpop.f32.mrb[0].mxu0
    %v2199 = vpop.f32.mrb[0].mxu0
    %v2200 = vadd.f32 0.0, %v2199
    %v2201 = vpop.f32.mrb[0].mxu0
    %2202 = vmatprep.mubr.bf16.mxu0 0
    %2203 = vmatmul.mubr.bf16.gmra.mrb[0].mxu0 %v547
    %v2204 = vpop.f32.mrb[0].mxu0
    %v2205 = vadd.f32 0.0, %v2204
    %v2206 = vpop.f32.mrb[0].mxu0
    %v2207 = vpop.f32.mrb[0].mxu0
    %v2208 = vadd.f32 0.0, %v2207
    %v2209 = vpop.f32.mrb[0].mxu0
    %2210 = vmatprep.mubr.bf16.mxu0 0
    %2211 = vmatmul.mubr.bf16.gmra.mrb[0].mxu0 %v548
    %v2212 = vpop.f32.mrb[0].mxu0
    %v2213 = vadd.f32 0.0, %v2212
    %v2214 = vpop.f32.mrb[0].mxu0
    %v2215 = vpop.f32.mrb[0].mxu0
    %v2216 = vadd.f32 0.0, %v2215
    %v2217 = vpop.f32.mrb[0].mxu0
    %2218 = vmatprep.mubr.bf16.mxu0 0
    %2219 = vmatmul.mubr.bf16.gmra.mrb[0].mxu0 %v549
    %v2220 = vpop.f32.mrb[0].mxu0
    %v2221 = vadd.f32 0.0, %v2220
    %v2222 = vpop.f32.mrb[0].mxu0
    %v2223 = vpop.f32.mrb[0].mxu0
    %v2224 = vadd.f32 0.0, %v2223
    %v2225 = vpop.f32.mrb[0].mxu0
    %2226 = vmatprep.mubr.bf16.mxu0 0
    %2227 = vmatmul.mubr.bf16.gmra.mrb[0].mxu0 %v550
    %v2228 = vpop.f32.mrb[0].mxu0
    %v2229 = vadd.f32 0.0, %v2228
    %v2230 = vpop.f32.mrb[0].mxu0
    %v2231 = vpop.f32.mrb[0].mxu0
    %v2232 = vadd.f32 0.0, %v2231
    %v2233 = vpop.f32.mrb[0].mxu0
    %2234 = vdwg.mxu0
    %v2235 = vmax.f32 %v2173, %v2189
    %v2236 = vmax.f32 %v2176, %v2192
    %v2237 = vmax.f32 %v2181, %v2197
    %v2238 = vmax.f32 %v2184, %v2200
    %v2239 = vmax.f32 %v2235, %v2236
    %v2240 = vmax.f32 %v2237, %v2238
    %v2241 = vmax.f32 %v2239, %v2240
    %v2242 = vrot.slane %v2241, 4
    %v2243 = vmax.f32 %v2241, %v2242
    %v2244 = vrot.slane %v2243, 2
    %v2245 = vmax.f32 %v2243, %v2244
    %v2246 = vrot.slane %v2245, 1
    %v2247 = vmax.f32 %v2245, %v2246
    %v2248 = vmax.f32 %v2205, %v2221
    %v2249 = vmax.f32 %v2208, %v2224
    %v2250 = vmax.f32 %v2213, %v2229
    %v2251 = vmax.f32 %v2216, %v2232
    %v2252 = vmax.f32 %v2248, %v2249
    %v2253 = vmax.f32 %v2250, %v2251
    %v2254 = vmax.f32 %v2252, %v2253
    %v2255 = vrot.slane %v2254, 4
    %v2256 = vmax.f32 %v2254, %v2255
    %v2257 = vrot.slane %v2256, 2
    %v2258 = vmax.f32 %v2256, %v2257
    %v2259 = vrot.slane %v2258, 1
    %v2260 = vmax.f32 %v2258, %v2259
    %2261 = vmatprep.subr.bf16.mxu0 0
    %2262 = vmatpush1.bf16.msra.mxu0 %v1884
    %2263 = vmatprep.subr.bf16.mxu0 0
    %2264 = vmatpush1.bf16.msra.mxu0 %v1885
    %2265 = vmatprep.subr.bf16.mxu0 0
    %2266 = vmatpush1.bf16.msra.mxu0 %v1886
    %2267 = vmatprep.subr.bf16.mxu0 0
    %2268 = vmatpush1.bf16.msra.mxu0 %v1887
    %2269 = vmatprep.subr.bf16.mxu0 0
    %2270 = vmatpush1.bf16.msra.mxu0 %v1888
    %2271 = vmatprep.subr.bf16.mxu0 0
    %2272 = vmatpush1.bf16.msra.mxu0 %v1889
    %2273 = vmatprep.subr.bf16.mxu0 0
    %2274 = vmatpush1.bf16.msra.mxu0 %v1890
    %2275 = vmatprep.subr.bf16.mxu0 0
    %2276 = vmatpush1.bf16.msra.mxu0 %v1891
    %2277 = vmatprep.subr.bf16.mxu0 0
    %2278 = vmatpush1.bf16.msra.mxu0 0
    %2279 = vmatprep.subr.bf16.mxu0 0
    %2280 = vmatpush1.bf16.msra.mxu0 0
    %2281 = vmatprep.subr.bf16.mxu0 0
    %2282 = vmatpush1.bf16.msra.mxu0 0
    %2283 = vmatprep.subr.bf16.mxu0 0
    %2284 = vmatpush1.bf16.msra.mxu0 0
    %2285 = vmatprep.subr.bf16.mxu0 0
    %2286 = vmatpush1.bf16.msra.mxu0 0
    %2287 = vmatprep.subr.bf16.mxu0 0
    %2288 = vmatpush1.bf16.msra.mxu0 0
    %2289 = vmatprep.subr.bf16.mxu0 0
    %2290 = vmatpush1.bf16.msra.mxu0 0
    %2291 = vmatprep.subr.bf16.mxu0 0
    %2292 = vmatpush1.bf16.msra.mxu0 0
    %2293 = vmatprep.mubr.bf16.mxu0 0
    %2294 = vmatmul.mubr.bf16.gmra.mrb[0].mxu0 %v770
    %v2295 = vpop.f32.mrb[0].mxu0
    %v2296 = vadd.f32 0.0, %v2295
    %v2297 = vpop.f32.mrb[0].mxu0
    %v2298 = vpop.f32.mrb[0].mxu0
    %v2299 = vadd.f32 0.0, %v2298
    %v2300 = vpop.f32.mrb[0].mxu0
    %2301 = vmatprep.mubr.bf16.mxu0 0
    %2302 = vmatmul.mubr.bf16.gmra.mrb[0].mxu0 %v771
    %v2303 = vpop.f32.mrb[0].mxu0
    %v2304 = vadd.f32 0.0, %v2303
    %v2305 = vpop.f32.mrb[0].mxu0
    %v2306 = vpop.f32.mrb[0].mxu0
    %v2307 = vadd.f32 0.0, %v2306
    %v2308 = vpop.f32.mrb[0].mxu0
    %2309 = vmatprep.mubr.bf16.mxu0 0
    %2310 = vmatmul.mubr.bf16.gmra.mrb[0].mxu0 %v772
    %v2311 = vpop.f32.mrb[0].mxu0
    %v2312 = vadd.f32 0.0, %v2311
    %v2313 = vpop.f32.mrb[0].mxu0
    %v2314 = vpop.f32.mrb[0].mxu0
    %v2315 = vadd.f32 0.0, %v2314
    %v2316 = vpop.f32.mrb[0].mxu0
    %2317 = vmatprep.mubr.bf16.mxu0 0
    %2318 = vmatmul.mubr.bf16.gmra.mrb[0].mxu0 %v773
    %v2319 = vpop.f32.mrb[0].mxu0
    %v2320 = vadd.f32 0.0, %v2319
    %v2321 = vpop.f32.mrb[0].mxu0
    %v2322 = vpop.f32.mrb[0].mxu0
    %v2323 = vadd.f32 0.0, %v2322
    %v2324 = vpop.f32.mrb[0].mxu0
    %2325 = vmatprep.mubr.bf16.mxu0 0
    %2326 = vmatmul.mubr.bf16.gmra.mrb[0].mxu0 %v774
    %v2327 = vpop.f32.mrb[0].mxu0
    %v2328 = vadd.f32 0.0, %v2327
    %v2329 = vpop.f32.mrb[0].mxu0
    %v2330 = vpop.f32.mrb[0].mxu0
    %v2331 = vadd.f32 0.0, %v2330
    %v2332 = vpop.f32.mrb[0].mxu0
    %2333 = vmatprep.mubr.bf16.mxu0 0
    %2334 = vmatmul.mubr.bf16.gmra.mrb[0].mxu0 %v775
    %v2335 = vpop.f32.mrb[0].mxu0
    %v2336 = vadd.f32 0.0, %v2335
    %v2337 = vpop.f32.mrb[0].mxu0
    %v2338 = vpop.f32.mrb[0].mxu0
    %v2339 = vadd.f32 0.0, %v2338
    %v2340 = vpop.f32.mrb[0].mxu0
    %2341 = vmatprep.mubr.bf16.mxu0 0
    %2342 = vmatmul.mubr.bf16.gmra.mrb[0].mxu0 %v776
    %v2343 = vpop.f32.mrb[0].mxu0
    %v2344 = vadd.f32 0.0, %v2343
    %v2345 = vpop.f32.mrb[0].mxu0
    %v2346 = vpop.f32.mrb[0].mxu0
    %v2347 = vadd.f32 0.0, %v2346
    %v2348 = vpop.f32.mrb[0].mxu0
    %2349 = vmatprep.mubr.bf16.mxu0 0
    %2350 = vmatmul.mubr.bf16.gmra.mrb[0].mxu0 %v777
    %v2351 = vpop.f32.mrb[0].mxu0
    %v2352 = vadd.f32 0.0, %v2351
    %v2353 = vpop.f32.mrb[0].mxu0
    %v2354 = vpop.f32.mrb[0].mxu0
    %v2355 = vadd.f32 0.0, %v2354
    %v2356 = vpop.f32.mrb[0].mxu0
    %2357 = vdwg.mxu0
    %v2358 = vmax.f32 %v2296, %v2312
    %v2359 = vmax.f32 %v2299, %v2315
    %v2360 = vmax.f32 %v2304, %v2320
    %v2361 = vmax.f32 %v2307, %v2323
    %v2362 = vmax.f32 %v2358, %v2359
    %v2363 = vmax.f32 %v2360, %v2361
    %v2364 = vmax.f32 %v2362, %v2363
    %v2365 = vrot.slane %v2364, 4
    %v2366 = vmax.f32 %v2364, %v2365
    %v2367 = vrot.slane %v2366, 2
    %v2368 = vmax.f32 %v2366, %v2367
    %v2369 = vrot.slane %v2368, 1
    %v2370 = vmax.f32 %v2368, %v2369
    %v2371 = vmax.f32 %v2328, %v2344
    %v2372 = vmax.f32 %v2331, %v2347
    %v2373 = vmax.f32 %v2336, %v2352
    %v2374 = vmax.f32 %v2339, %v2355
    %v2375 = vmax.f32 %v2371, %v2372
    %v2376 = vmax.f32 %v2373, %v2374
    %v2377 = vmax.f32 %v2375, %v2376
    %v2378 = vrot.slane %v2377, 4
    %v2379 = vmax.f32 %v2377, %v2378
    %v2380 = vrot.slane %v2379, 2
    %v2381 = vmax.f32 %v2379, %v2380
    %v2382 = vrot.slane %v2381, 1
    %v2383 = vmax.f32 %v2381, %v2382
    %vm2384 = vcmask 1040384
    %v2385 = vsel %vm2384, %v2001, %v2014
    %vm2386 = vcmask 1041408
    %v2387 = vsel %vm2386, %v2385, %v2124
    %vm2388 = vcmask 1042432
    %v2389 = vsel %vm2388, %v2387, %v2137
    %v2390 = vsel %vm1074, %v2389, %v2247
    %v2391 = vsel %vm1075, %v2390, %v2260
    %vm2392 = vcmask 1045504
    %v2393 = vsel %vm2392, %v2391, %v2370
    %vm2394 = vcmask 1046528
    %v2395 = vsel %vm2394, %v2393, %v2383
    %v2396 = vld [vmem:[%s5] sm:$0x1]
    %v2398 = vlaneseq
    %v2399 = vshrl.u32 %v2398, 7
    %v2400 = vsub.s32 0, %v2399
    %v2401 = vrot.slane %v2396, %v2400
    %v2403 = vadd.f32 %v2395, %v2401
    %2404 = vst [vmem:[#allocation2] sm:$0xff] %v2403
    // Predicated region
    $region26: #{tpu_custom_call.1} parent=1 // pred_check
      _
    $region27: #{tpu_custom_call.1} parent=1 // pred_check_branch
      %2406 = sbr.rel (0) target = $region29
    $region28: #{tpu_custom_call.1} parent=1 // pred_region
      %s2408 = ssub.s32 128, 128
      %2409 = vsyncadd [#allocation3], %s2408
      %s2411 = sshll.u32 [#allocation2], 4
      %s2412 = int_to_ptr.vmem [resolvable:$true] %s2411
      %2414 = dma.vmem_to_hbm [thread:$0]  %s2412, 128, %s6, [#allocation3]
    $region29: #{tpu_custom_call.1} parent=1 // pred_fallthru
      _
    // Predicated region
    $region30: #{tpu_custom_call.1} parent=1 // pred_check
      _
    $region31: #{tpu_custom_call.1} parent=1 // pred_check_branch
      %2416 = sbr.rel (0) target = $region33
    $region32: #{tpu_custom_call.1} parent=1 // pred_region
      %2417 = dma.done [#allocation3], 128
    $region33: #{tpu_custom_call.1} parent=1 // pred_fallthru
      _
    %2418 = vsyncpa [#allocation3], 1

</llo_original>
